<compile_context>
chip_gen: v6e
topology: v6e:2x2x1
jax: 0.10.0
libtpu: 0.0.40
codegen_flags: <defaults>
</compile_context>

<pallas_src>
import functools
import math

import jax
import jax.numpy as jnp
import numpy as np
from jax.experimental import pallas as pl
from jax.experimental.pallas import tpu as pltpu

_LANE = 128


def _round_up(n, m):
    return ((n + m - 1) // m) * m


def _pad_last(a, target):
    if a.shape[-1] == target:
        return a
    cfg = [(0, 0)] * (a.ndim - 1) + [(0, target - a.shape[-1])]
    return jnp.pad(a, cfg)


def _pad_to(a, shape):
    pads = [(0, t - s) for s, t in zip(a.shape, shape)]
    if all(p == (0, 0) for p in pads):
        return a
    return jnp.pad(a, pads)


def _gelu_tanh(x):
    # tanh approximation of GELU (same formula used in kernel and reference).
    return 0.5 * x * (1.0 + jnp.tanh(0.7978845608028654 *
                                     (x + 0.044715 * (x * x * x))))


def _densify_grouped_weight(w, groups):
    """(C_out, C_in/groups, K) grouped Conv1d weight -> block-diagonal dense
    (C_out, C_in, K)."""
    c_out, cg, k = w.shape
    c_in = cg * groups
    out_per_g = c_out // groups
    w_dense = jnp.zeros((c_out, c_in, k), w.dtype)
    for gi in range(groups):
        w_dense = w_dense.at[gi * out_per_g:(gi + 1) * out_per_g,
                             gi * cg:(gi + 1) * cg, :].set(
            w[gi * out_per_g:(gi + 1) * out_per_g])
    return w_dense


def _layer_kernel(xm_ref, x_ref, wce_ref, bce_ref, wdw_ref, bdw_ref, g_ref,
                  w1_ref, b1_ref, w2_ref, b2_ref, o_ref, y0s_ref, *, K, pad, L):
    """One ConvPositionEmbed layer for one batch element.

    xm_ref : (1, L, Cip)  bf16   masked conv_embed input (cat([x,*args])*mask)
    x_ref  : (1, L, Cp)   f32    residual input
    wce    : (Cip, Cp)    bf16   1x1 conv weight
    wdw    : (K, Cp, Cp)  bf16   densified grouped conv weight (per tap)
    g      : (1, Cp)      f32    RMSNorm gamma * sqrt(dim)
    w1/w2  : (Cp,Fp)/(Fp,Cp) bf16  pointwise MLP weights
    o_ref  : (1, L, Cp)   f32    x + layer(x)
    y0s    : (L+2*pad,Cp) bf16   zero-padded staging buffer for conv taps
    """
    # ---- conv_embed: 1x1 conv == (L, Cin) @ (Cin, C) on the MXU ------------
    y0 = jnp.dot(xm_ref[0], wce_ref[...], preferred_element_type=jnp.float32)
    y0 = y0 + bce_ref[...]                                  # (L, Cp) f32

    # ---- grouped conv along L: staging buffer + K tap matmuls --------------
    y0s_ref[...] = jnp.zeros_like(y0s_ref)                  # zero halos
    y0s_ref[pl.ds(pad, L), :] = y0.astype(y0s_ref.dtype)
    acc = jnp.dot(y0s_ref[pl.ds(0, L), :], wdw_ref[0],
                  preferred_element_type=jnp.float32)
    for k in range(1, K):                                   # small static K
        acc = acc + jnp.dot(y0s_ref[pl.ds(k, L), :], wdw_ref[k],
                            preferred_element_type=jnp.float32)
    y1 = acc + bdw_ref[...]                                 # (L, Cp) f32

    # ---- RMSNorm over channels (padded channels are exactly zero) ----------
    ssq = jnp.sum(y1 * y1, axis=-1, keepdims=True)
    y2 = y1 * jax.lax.rsqrt(jnp.maximum(ssq, 1e-24)) * g_ref[...]

    # ---- pointwise MLP: Linear -> GELU -> Linear (dropout p=0 == identity) -
    h = jnp.dot(y2.astype(jnp.bfloat16), w1_ref[...],
                preferred_element_type=jnp.float32) + b1_ref[...]
    h = _gelu_tanh(h)
    y3 = jnp.dot(h.astype(jnp.bfloat16), w2_ref[...],
                 preferred_element_type=jnp.float32) + b2_ref[...]

    # ---- residual -----------------------------------------------------------
    o_ref[0] = (x_ref[0] + y3).astype(o_ref.dtype)


def conv_position_embed_forward(x, x_mask, layers, *args, groups, kernel_size):
    """ConvPositionEmbed.forward.

    x      : (B, C_out, L)   channels-first, like the PyTorch module
    x_mask : (B, 1, L)
    layers : list of per-layer param dicts in torch layouts:
             w_ce (C_out,C_in,1)  b_ce (C_out,)
             w_dw (C_out,C_out//groups,K)  b_dw (C_out,)
             g (C_out,)  w1 (F,C_out)  b1 (F,)  w2 (C_out,F)  b2 (C_out,)
    args   : optional extra (B, C_extra, L) tensors concatenated on channels.
    """
    B, C, L = x.shape
    K = kernel_size
    pad = K // 2
    Cp = _round_up(C, _LANE)

    # layout glue (plain JAX): NCL -> NLC, mask applied outside the kernel
    x_nlc = jnp.transpose(x, (0, 2, 1)).astype(jnp.float32)          # (B, L, C)
    m_nlc = jnp.transpose(x_mask, (0, 2, 1)).astype(jnp.float32)     # (B, L, 1)
    args_nlc = [jnp.transpose(a, (0, 2, 1)).astype(jnp.float32) for a in args]

    x_p = _pad_last(x_nlc, Cp)                                       # (B, L, Cp)

    for p in layers:
        C_in = p['w_ce'].shape[1]
        Fch = p['w1'].shape[0]
        Cip = _round_up(C_in, _LANE)
        Fp = _round_up(Fch, _LANE)

        cond = x_nlc if not args_nlc else jnp.concatenate(
            [x_nlc, *args_nlc], axis=-1)
        assert cond.shape[-1] == C_in
        # masked conv_embed input, bf16 for the MXU / half the DMA bytes
        xm = _pad_last(cond * m_nlc, Cip).astype(jnp.bfloat16)

        # weights -> channels-last matmul layouts, zero-padded, bf16
        w_ce = _pad_to(jnp.transpose(p['w_ce'][:, :, 0], (1, 0)),
                       (Cip, Cp)).astype(jnp.bfloat16)
        b_ce = _pad_last(p['b_ce'][None, :], Cp).astype(jnp.float32)
        w_dw = _densify_grouped_weight(p['w_dw'], groups)            # (C, C, K)
        w_dw = _pad_to(jnp.transpose(w_dw, (2, 1, 0)),
                       (K, Cp, Cp)).astype(jnp.bfloat16)
        b_dw = _pad_last(p['b_dw'][None, :], Cp).astype(jnp.float32)
        g = _pad_last((p['g'] * math.sqrt(C))[None, :],              # fold sqrt(dim)
                      Cp).astype(jnp.float32)
        w1 = _pad_to(p['w1'].T, (Cp, Fp)).astype(jnp.bfloat16)
        b1 = _pad_last(p['b1'][None, :], Fp).astype(jnp.float32)
        w2 = _pad_to(p['w2'].T, (Fp, Cp)).astype(jnp.bfloat16)
        b2 = _pad_last(p['b2'][None, :], Cp).astype(jnp.float32)

        kernel = functools.partial(_layer_kernel, K=K, pad=pad, L=L)

        flops = 2 * B * L * (Cip * Cp + K * Cp * Cp + Cp * Fp + Fp * Cp)
        transcendentals = B * L * (Fp + 1)
        bytes_accessed = (xm.size * 2 + x_p.size * 4 + B * L * Cp * 4 +
                          (w_ce.size + w_dw.size + w1.size + w2.size) * 2 +
                          (b_ce.size + b_dw.size + g.size + b1.size + b2.size) * 4)

        x_p = pl.pallas_call(
            kernel,
            out_shape=jax.ShapeDtypeStruct((B, L, Cp), jnp.float32),
            grid_spec=pltpu.PrefetchScalarGridSpec(
                num_scalar_prefetch=0,
                grid=(B,),
                in_specs=[
                    pl.BlockSpec((1, L, Cip), lambda b: (b, 0, 0)),   # xm
                    pl.BlockSpec((1, L, Cp), lambda b: (b, 0, 0)),    # x (residual)
                    pl.BlockSpec((Cip, Cp), lambda b: (0, 0)),        # w_ce
                    pl.BlockSpec((1, Cp), lambda b: (0, 0)),          # b_ce
                    pl.BlockSpec((K, Cp, Cp), lambda b: (0, 0, 0)),   # w_dw
                    pl.BlockSpec((1, Cp), lambda b: (0, 0)),          # b_dw
                    pl.BlockSpec((1, Cp), lambda b: (0, 0)),          # gamma*sqrt(C)
                    pl.BlockSpec((Cp, Fp), lambda b: (0, 0)),         # w1
                    pl.BlockSpec((1, Fp), lambda b: (0, 0)),          # b1
                    pl.BlockSpec((Fp, Cp), lambda b: (0, 0)),         # w2
                    pl.BlockSpec((1, Cp), lambda b: (0, 0)),          # b2
                ],
                out_specs=pl.BlockSpec((1, L, Cp), lambda b: (b, 0, 0)),
                scratch_shapes=[pltpu.VMEM((L + 2 * pad, Cp), jnp.bfloat16)],
            ),
            compiler_params=pltpu.CompilerParams(
                dimension_semantics=("parallel",),
                vmem_limit_bytes=48 * 1024 * 1024),
            cost_estimate=pl.CostEstimate(
                flops=flops, transcendentals=transcendentals,
                bytes_accessed=bytes_accessed),
        )(xm, x_p, w_ce, b_ce, w_dw, b_dw, g, w1, b1, w2, b2)

        x_nlc = x_p[..., :C]          # drop lane padding for next layer / output

    out = x_nlc * m_nlc               # final `x * x_mask` (plain-JAX glue)
    return jnp.transpose(out, (0, 2, 1))


# ----------------------------------------------------------------------------
# pure-JAX reference (f32) + param init + demo
# ----------------------------------------------------------------------------
def _reference_forward(x, x_mask, layers, *args, groups, kernel_size):
    pad = kernel_size // 2
    for p in layers:
        cond = x if not args else jnp.concatenate([x, *args], axis=1)
        y = cond * x_mask
        y = jnp.einsum('bil,oi->bol', y, p['w_ce'][:, :, 0]) + p['b_ce'][None, :, None]
        y = jax.lax.conv_general_dilated(
            y, p['w_dw'], window_strides=(1,), padding=[(pad, pad)],
            dimension_numbers=('NCH', 'OIH', 'NCH'),
            feature_group_count=groups) + p['b_dw'][None, :, None]
        yt = jnp.transpose(y, (0, 2, 1))
        ssq = jnp.sum(yt * yt, axis=-1, keepdims=True)
        yt = yt * jax.lax.rsqrt(jnp.maximum(ssq, 1e-24))
        yt = yt * math.sqrt(yt.shape[-1]) * p['g'][None, None, :]
        h = _gelu_tanh(yt @ p['w1'].T + p['b1'])
        yt = h @ p['w2'].T + p['b2']
        x = x + jnp.transpose(yt, (0, 2, 1))
    return x * x_mask


def _uniform(key, shape, bound):
    return jax.random.uniform(key, shape, minval=-bound, maxval=bound,
                              dtype=jnp.float32)


def init_conv_position_embed_params(key, in_channels, out_channels, groups,
                                    n_layers, kernel_size):
    filter_channels = 2 * out_channels
    layers = []
    for _ in range(n_layers):
        key, *ks = jax.random.split(key, 9)
        fan_ce = in_channels
        fan_dw = (out_channels // groups) * kernel_size
        layers.append(dict(
            w_ce=_uniform(ks[0], (out_channels, in_channels, 1), 1 / math.sqrt(fan_ce)),
            b_ce=_uniform(ks[1], (out_channels,), 1 / math.sqrt(fan_ce)),
            w_dw=_uniform(ks[2], (out_channels, out_channels // groups, kernel_size),
                          1 / math.sqrt(fan_dw)),
            b_dw=_uniform(ks[3], (out_channels,), 1 / math.sqrt(fan_dw)),
            g=jnp.ones((out_channels,), jnp.float32),
            w1=_uniform(ks[4], (filter_channels, out_channels), 1 / math.sqrt(out_channels)),
            b1=_uniform(ks[5], (filter_channels,), 1 / math.sqrt(out_channels)),
            w2=_uniform(ks[6], (out_channels, filter_channels), 1 / math.sqrt(filter_channels)),
            b2=_uniform(ks[7], (out_channels,), 1 / math.sqrt(filter_channels)),
        ))
    return layers


if __name__ == "__main__":
    # ConvPositionEmbed(in_channels=32, out_channels=32, groups=8,
    #                   n_layers=2, kernel_size=7) on x:(2, 32, 16), mask:(2, 1, 16)
    B, C_in, C_out, L = 2, 32, 32, 16
    groups, K, n_layers = 8, 7, 2

    key = jax.random.PRNGKey(0)
    k_p, k_x, k_m = jax.random.split(key, 3)
    layers = init_conv_position_embed_params(k_p, C_in, C_out, groups, n_layers, K)
    x = jax.random.normal(k_x, (B, C_out, L), dtype=jnp.float32)
    x_mask = (jax.random.uniform(k_m, (B, 1, L)) > 0.2).astype(jnp.float32)

    out = conv_position_embed_forward(x, x_mask, layers,
                                      groups=groups, kernel_size=K)
    out = jax.block_until_ready(out)

    ref = _reference_forward(x, x_mask, layers, groups=groups, kernel_size=K)
    assert out.shape == (B, C_out, L)
    # tolerance covers the bf16 MXU operands in the kernel vs. the f32 reference
    np.testing.assert_allclose(np.asarray(out), np.asarray(ref),
                               rtol=5e-2, atol=5e-2)
    print("KERNEL_OK")
</pallas_src>

<mosaic_0001>
module attributes {stable_mosaic.version = 11 : i64} {
  func.func @_layer_kernel(%arg0: i32, %arg1: memref<1x16x128xbf16, #tpu.memory_space<vmem>>, %arg2: memref<1x16x128xf32, #tpu.memory_space<vmem>>, %arg3: memref<128x128xbf16, #tpu.memory_space<vmem>>, %arg4: memref<1x128xf32, #tpu.memory_space<vmem>>, %arg5: memref<7x128x128xbf16, #tpu.memory_space<vmem>>, %arg6: memref<1x128xf32, #tpu.memory_space<vmem>>, %arg7: memref<1x128xf32, #tpu.memory_space<vmem>>, %arg8: memref<128x128xbf16, #tpu.memory_space<vmem>>, %arg9: memref<1x128xf32, #tpu.memory_space<vmem>>, %arg10: memref<128x128xbf16, #tpu.memory_space<vmem>>, %arg11: memref<1x128xf32, #tpu.memory_space<vmem>>, %arg12: memref<1x16x128xf32, #tpu.memory_space<vmem>>, %arg13: memref<22x128xbf16, #tpu.memory_space<vmem>>) attributes {dimension_semantics = [#tpu.dimension_semantics<parallel>], iteration_bounds = array<i64: 2>, scalar_prefetch = 0 : i64, scratch_operands = 1 : i64, tpu.core_type = #tpu.core_type<tc>, window_params = [{transform_indices = @transform_0, window_bounds = array<i64: 1, 16, 128>}, {transform_indices = @transform_1, window_bounds = array<i64: 1, 16, 128>}, {pipeline_mode = #tpu.pipeline_mode<synchronous>, transform_indices = @transform_2, window_bounds = array<i64: 128, 128>}, {pipeline_mode = #tpu.pipeline_mode<synchronous>, transform_indices = @transform_3, window_bounds = array<i64: 1, 128>}, {pipeline_mode = #tpu.pipeline_mode<synchronous>, transform_indices = @transform_4, window_bounds = array<i64: 7, 128, 128>}, {pipeline_mode = #tpu.pipeline_mode<synchronous>, transform_indices = @transform_5, window_bounds = array<i64: 1, 128>}, {pipeline_mode = #tpu.pipeline_mode<synchronous>, transform_indices = @transform_6, window_bounds = array<i64: 1, 128>}, {pipeline_mode = #tpu.pipeline_mode<synchronous>, transform_indices = @transform_7, window_bounds = array<i64: 128, 128>}, {pipeline_mode = #tpu.pipeline_mode<synchronous>, transform_indices = @transform_8, window_bounds = array<i64: 1, 128>}, {pipeline_mode = #tpu.pipeline_mode<synchronous>, transform_indices = @transform_9, window_bounds = array<i64: 128, 128>}, {pipeline_mode = #tpu.pipeline_mode<synchronous>, transform_indices = @transform_10, window_bounds = array<i64: 1, 128>}, {transform_indices = @transform_11, window_bounds = array<i64: 1, 16, 128>}]} {
    %c0 = arith.constant 0 : index
    %c0_0 = arith.constant 0 : index
    %c0_1 = arith.constant 0 : index
    %0 = vector.load %arg1[%c0, %c0_0, %c0_1] : memref<1x16x128xbf16, #tpu.memory_space<vmem>>, vector<1x16x128xbf16>
    %1 = vector.shape_cast %0 : vector<1x16x128xbf16> to vector<16x128xbf16>
    %c0_2 = arith.constant 0 : index
    %c0_3 = arith.constant 0 : index
    %2 = vector.load %arg3[%c0_2, %c0_3] : memref<128x128xbf16, #tpu.memory_space<vmem>>, vector<128x128xbf16>
    %cst = arith.constant dense<0.000000e+00> : vector<16x128xf32>
    %3 = tpu.matmul %1, %2, %cst {dimension_numbers = #tpu.dot_dimension_numbers<[1], [0], [0], [1], [0, 0, 1, 1], [], []>} : vector<16x128xbf16>, vector<128x128xbf16>, vector<16x128xf32> -> vector<16x128xf32>
    %c0_4 = arith.constant 0 : index
    %c0_5 = arith.constant 0 : index
    %4 = vector.load %arg4[%c0_4, %c0_5] : memref<1x128xf32, #tpu.memory_space<vmem>>, vector<1x128xf32>
    %5 = vector.broadcast %4 : vector<1x128xf32> to vector<16x128xf32>
    %6 = arith.addf %3, %5 : vector<16x128xf32>
    %cst_6 = arith.constant 0.000000e+00 : bf16
    %7 = vector.broadcast %cst_6 : bf16 to vector<22x128xbf16>
    %c0_7 = arith.constant 0 : index
    %c0_8 = arith.constant 0 : index
    %8 = vector.load %arg13[%c0_7, %c0_8] : memref<22x128xbf16, #tpu.memory_space<vmem>>, vector<22x128xbf16>
    tpu.vector_store %arg13[%c0_7, %c0_8], %7 {strides = array<i32>} : memref<22x128xbf16, #tpu.memory_space<vmem>>, vector<22x128xbf16>,
    %9 = arith.truncf %6 : vector<16x128xf32> to vector<16x128xbf16>
    %c3 = arith.constant 3 : index
    %c0_9 = arith.constant 0 : index
    %10 = vector.load %arg13[%c3, %c0_9] : memref<22x128xbf16, #tpu.memory_space<vmem>>, vector<16x128xbf16>
    tpu.vector_store %arg13[%c3, %c0_9], %9 {strides = array<i32>} : memref<22x128xbf16, #tpu.memory_space<vmem>>, vector<16x128xbf16>,
    %c0_10 = arith.constant 0 : index
    %c0_11 = arith.constant 0 : index
    %11 = vector.load %arg13[%c0_10, %c0_11] : memref<22x128xbf16, #tpu.memory_space<vmem>>, vector<16x128xbf16>
    %c0_12 = arith.constant 0 : index
    %c0_13 = arith.constant 0 : index
    %c0_14 = arith.constant 0 : index
    %12 = vector.load %arg5[%c0_12, %c0_13, %c0_14] : memref<7x128x128xbf16, #tpu.memory_space<vmem>>, vector<1x128x128xbf16>
    %13 = vector.shape_cast %12 : vector<1x128x128xbf16> to vector<128x128xbf16>
    %cst_15 = arith.constant dense<0.000000e+00> : vector<16x128xf32>
    %14 = tpu.matmul %11, %13, %cst_15 {dimension_numbers = #tpu.dot_dimension_numbers<[1], [0], [0], [1], [0, 0, 1, 1], [], []>} : vector<16x128xbf16>, vector<128x128xbf16>, vector<16x128xf32> -> vector<16x128xf32>
    %c1 = arith.constant 1 : index
    %c0_16 = arith.constant 0 : index
    %15 = vector.load %arg13[%c1, %c0_16] : memref<22x128xbf16, #tpu.memory_space<vmem>>, vector<16x128xbf16>
    %c1_17 = arith.constant 1 : index
    %c0_18 = arith.constant 0 : index
    %c0_19 = arith.constant 0 : index
    %16 = vector.load %arg5[%c1_17, %c0_18, %c0_19] : memref<7x128x128xbf16, #tpu.memory_space<vmem>>, vector<1x128x128xbf16>
    %17 = vector.shape_cast %16 : vector<1x128x128xbf16> to vector<128x128xbf16>
    %cst_20 = arith.constant dense<0.000000e+00> : vector<16x128xf32>
    %18 = tpu.matmul %15, %17, %cst_20 {dimension_numbers = #tpu.dot_dimension_numbers<[1], [0], [0], [1], [0, 0, 1, 1], [], []>} : vector<16x128xbf16>, vector<128x128xbf16>, vector<16x128xf32> -> vector<16x128xf32>
    %19 = arith.addf %14, %18 : vector<16x128xf32>
    %c2 = arith.constant 2 : index
    %c0_21 = arith.constant 0 : index
    %20 = vector.load %arg13[%c2, %c0_21] : memref<22x128xbf16, #tpu.memory_space<vmem>>, vector<16x128xbf16>
    %c2_22 = arith.constant 2 : index
    %c0_23 = arith.constant 0 : index
    %c0_24 = arith.constant 0 : index
    %21 = vector.load %arg5[%c2_22, %c0_23, %c0_24] : memref<7x128x128xbf16, #tpu.memory_space<vmem>>, vector<1x128x128xbf16>
    %22 = vector.shape_cast %21 : vector<1x128x128xbf16> to vector<128x128xbf16>
    %cst_25 = arith.constant dense<0.000000e+00> : vector<16x128xf32>
    %23 = tpu.matmul %20, %22, %cst_25 {dimension_numbers = #tpu.dot_dimension_numbers<[1], [0], [0], [1], [0, 0, 1, 1], [], []>} : vector<16x128xbf16>, vector<128x128xbf16>, vector<16x128xf32> -> vector<16x128xf32>
    %24 = arith.addf %19, %23 : vector<16x128xf32>
    %c3_26 = arith.constant 3 : index
    %c0_27 = arith.constant 0 : index
    %25 = vector.load %arg13[%c3_26, %c0_27] : memref<22x128xbf16, #tpu.memory_space<vmem>>, vector<16x128xbf16>
    %c3_28 = arith.constant 3 : index
    %c0_29 = arith.constant 0 : index
    %c0_30 = arith.constant 0 : index
    %26 = vector.load %arg5[%c3_28, %c0_29, %c0_30] : memref<7x128x128xbf16, #tpu.memory_space<vmem>>, vector<1x128x128xbf16>
    %27 = vector.shape_cast %26 : vector<1x128x128xbf16> to vector<128x128xbf16>
    %cst_31 = arith.constant dense<0.000000e+00> : vector<16x128xf32>
    %28 = tpu.matmul %25, %27, %cst_31 {dimension_numbers = #tpu.dot_dimension_numbers<[1], [0], [0], [1], [0, 0, 1, 1], [], []>} : vector<16x128xbf16>, vector<128x128xbf16>, vector<16x128xf32> -> vector<16x128xf32>
    %29 = arith.addf %24, %28 : vector<16x128xf32>
    %c4 = arith.constant 4 : index
    %c0_32 = arith.constant 0 : index
    %30 = vector.load %arg13[%c4, %c0_32] : memref<22x128xbf16, #tpu.memory_space<vmem>>, vector<16x128xbf16>
    %c4_33 = arith.constant 4 : index
    %c0_34 = arith.constant 0 : index
    %c0_35 = arith.constant 0 : index
    %31 = vector.load %arg5[%c4_33, %c0_34, %c0_35] : memref<7x128x128xbf16, #tpu.memory_space<vmem>>, vector<1x128x128xbf16>
    %32 = vector.shape_cast %31 : vector<1x128x128xbf16> to vector<128x128xbf16>
    %cst_36 = arith.constant dense<0.000000e+00> : vector<16x128xf32>
    %33 = tpu.matmul %30, %32, %cst_36 {dimension_numbers = #tpu.dot_dimension_numbers<[1], [0], [0], [1], [0, 0, 1, 1], [], []>} : vector<16x128xbf16>, vector<128x128xbf16>, vector<16x128xf32> -> vector<16x128xf32>
    %34 = arith.addf %29, %33 : vector<16x128xf32>
    %c5 = arith.constant 5 : index
    %c0_37 = arith.constant 0 : index
    %35 = vector.load %arg13[%c5, %c0_37] : memref<22x128xbf16, #tpu.memory_space<vmem>>, vector<16x128xbf16>
    %c5_38 = arith.constant 5 : index
    %c0_39 = arith.constant 0 : index
    %c0_40 = arith.constant 0 : index
    %36 = vector.load %arg5[%c5_38, %c0_39, %c0_40] : memref<7x128x128xbf16, #tpu.memory_space<vmem>>, vector<1x128x128xbf16>
    %37 = vector.shape_cast %36 : vector<1x128x128xbf16> to vector<128x128xbf16>
    %cst_41 = arith.constant dense<0.000000e+00> : vector<16x128xf32>
    %38 = tpu.matmul %35, %37, %cst_41 {dimension_numbers = #tpu.dot_dimension_numbers<[1], [0], [0], [1], [0, 0, 1, 1], [], []>} : vector<16x128xbf16>, vector<128x128xbf16>, vector<16x128xf32> -> vector<16x128xf32>
    %39 = arith.addf %34, %38 : vector<16x128xf32>
    %c6 = arith.constant 6 : index
    %c0_42 = arith.constant 0 : index
    %40 = vector.load %arg13[%c6, %c0_42] : memref<22x128xbf16, #tpu.memory_space<vmem>>, vector<16x128xbf16>
    %c6_43 = arith.constant 6 : index
    %c0_44 = arith.constant 0 : index
    %c0_45 = arith.constant 0 : index
    %41 = vector.load %arg5[%c6_43, %c0_44, %c0_45] : memref<7x128x128xbf16, #tpu.memory_space<vmem>>, vector<1x128x128xbf16>
    %42 = vector.shape_cast %41 : vector<1x128x128xbf16> to vector<128x128xbf16>
    %cst_46 = arith.constant dense<0.000000e+00> : vector<16x128xf32>
    %43 = tpu.matmul %40, %42, %cst_46 {dimension_numbers = #tpu.dot_dimension_numbers<[1], [0], [0], [1], [0, 0, 1, 1], [], []>} : vector<16x128xbf16>, vector<128x128xbf16>, vector<16x128xf32> -> vector<16x128xf32>
    %44 = arith.addf %39, %43 : vector<16x128xf32>
    %c0_47 = arith.constant 0 : index
    %c0_48 = arith.constant 0 : index
    %45 = vector.load %arg6[%c0_47, %c0_48] : memref<1x128xf32, #tpu.memory_space<vmem>>, vector<1x128xf32>
    %46 = vector.broadcast %45 : vector<1x128xf32> to vector<16x128xf32>
    %47 = arith.addf %44, %46 : vector<16x128xf32>
    %48 = arith.mulf %47, %47 : vector<16x128xf32>
    %cst_49 = arith.constant dense<0.000000e+00> : vector<16xf32>
    %49 = vector.multi_reduction <add>, %48, %cst_49 [1] : vector<16x128xf32> to vector<16xf32>
    %50 = vector.shape_cast %49 : vector<16xf32> to vector<16x1xf32>
    %cst_50 = arith.constant 1.000000e-24 : f32
    %51 = vector.broadcast %cst_50 : f32 to vector<16x1xf32>
    %52 = arith.maximumf %50, %51 : vector<16x1xf32>
    %53 = math.rsqrt %52 : vector<16x1xf32>
    %54 = vector.broadcast %53 : vector<16x1xf32> to vector<16x128xf32>
    %55 = arith.mulf %47, %54 : vector<16x128xf32>
    %c0_51 = arith.constant 0 : index
    %c0_52 = arith.constant 0 : index
    %56 = vector.load %arg7[%c0_51, %c0_52] : memref<1x128xf32, #tpu.memory_space<vmem>>, vector<1x128xf32>
    %57 = vector.broadcast %56 : vector<1x128xf32> to vector<16x128xf32>
    %58 = arith.mulf %55, %57 : vector<16x128xf32>
    %59 = arith.truncf %58 : vector<16x128xf32> to vector<16x128xbf16>
    %c0_53 = arith.constant 0 : index
    %c0_54 = arith.constant 0 : index
    %60 = vector.load %arg8[%c0_53, %c0_54] : memref<128x128xbf16, #tpu.memory_space<vmem>>, vector<128x128xbf16>
    %cst_55 = arith.constant dense<0.000000e+00> : vector<16x128xf32>
    %61 = tpu.matmul %59, %60, %cst_55 {dimension_numbers = #tpu.dot_dimension_numbers<[1], [0], [0], [1], [0, 0, 1, 1], [], []>} : vector<16x128xbf16>, vector<128x128xbf16>, vector<16x128xf32> -> vector<16x128xf32>
    %c0_56 = arith.constant 0 : index
    %c0_57 = arith.constant 0 : index
    %62 = vector.load %arg9[%c0_56, %c0_57] : memref<1x128xf32, #tpu.memory_space<vmem>>, vector<1x128xf32>
    %63 = vector.broadcast %62 : vector<1x128xf32> to vector<16x128xf32>
    %64 = arith.addf %61, %63 : vector<16x128xf32>
    %cst_58 = arith.constant 5.000000e-01 : f32
    %65 = vector.broadcast %cst_58 : f32 to vector<16x128xf32>
    %66 = arith.mulf %65, %64 : vector<16x128xf32>
    %67 = arith.mulf %64, %64 : vector<16x128xf32>
    %68 = arith.mulf %67, %64 : vector<16x128xf32>
    %cst_59 = arith.constant 4.471500e-02 : f32
    %69 = vector.broadcast %cst_59 : f32 to vector<16x128xf32>
    %70 = arith.mulf %69, %68 : vector<16x128xf32>
    %71 = arith.addf %64, %70 : vector<16x128xf32>
    %cst_60 = arith.constant 0.797884583 : f32
    %72 = vector.broadcast %cst_60 : f32 to vector<16x128xf32>
    %73 = arith.mulf %72, %71 : vector<16x128xf32>
    %74 = math.tanh %73 : vector<16x128xf32>
    %cst_61 = arith.constant 1.000000e+00 : f32
    %75 = vector.broadcast %cst_61 : f32 to vector<16x128xf32>
    %76 = arith.addf %75, %74 : vector<16x128xf32>
    %77 = arith.mulf %66, %76 : vector<16x128xf32>
    %78 = arith.truncf %77 : vector<16x128xf32> to vector<16x128xbf16>
    %c0_62 = arith.constant 0 : index
    %c0_63 = arith.constant 0 : index
    %79 = vector.load %arg10[%c0_62, %c0_63] : memref<128x128xbf16, #tpu.memory_space<vmem>>, vector<128x128xbf16>
    %cst_64 = arith.constant dense<0.000000e+00> : vector<16x128xf32>
    %80 = tpu.matmul %78, %79, %cst_64 {dimension_numbers = #tpu.dot_dimension_numbers<[1], [0], [0], [1], [0, 0, 1, 1], [], []>} : vector<16x128xbf16>, vector<128x128xbf16>, vector<16x128xf32> -> vector<16x128xf32>
    %c0_65 = arith.constant 0 : index
    %c0_66 = arith.constant 0 : index
    %81 = vector.load %arg11[%c0_65, %c0_66] : memref<1x128xf32, #tpu.memory_space<vmem>>, vector<1x128xf32>
    %82 = vector.broadcast %81 : vector<1x128xf32> to vector<16x128xf32>
    %83 = arith.addf %80, %82 : vector<16x128xf32>
    %c0_67 = arith.constant 0 : index
    %c0_68 = arith.constant 0 : index
    %c0_69 = arith.constant 0 : index
    %84 = vector.load %arg2[%c0_67, %c0_68, %c0_69] : memref<1x16x128xf32, #tpu.memory_space<vmem>>, vector<1x16x128xf32>
    %85 = vector.shape_cast %84 : vector<1x16x128xf32> to vector<16x128xf32>
    %86 = arith.addf %85, %83 : vector<16x128xf32>
    %c0_70 = arith.constant 0 : index
    %c0_71 = arith.constant 0 : index
    %c0_72 = arith.constant 0 : index
    %87 = vector.load %arg12[%c0_70, %c0_71, %c0_72] : memref<1x16x128xf32, #tpu.memory_space<vmem>>, vector<1x16x128xf32>
    %88 = vector.shape_cast %87 : vector<1x16x128xf32> to vector<16x128xf32>
    %89 = vector.shape_cast %86 : vector<16x128xf32> to vector<1x16x128xf32>
    tpu.vector_store %arg12[%c0_70, %c0_71, %c0_72], %89 {strides = array<i32>} : memref<1x16x128xf32, #tpu.memory_space<vmem>>, vector<1x16x128xf32>,
    return
  }
  func.func @transform_0(%arg0: i32) -> (i32, i32, i32) {
    %c0_i32 = arith.constant 0 : i32
    %c0_i32_0 = arith.constant 0 : i32
    %c0_i32_1 = arith.constant 0 : i32
    return %arg0, %c0_i32, %c0_i32_0 : i32, i32, i32
  }
  func.func @transform_1(%arg0: i32) -> (i32, i32, i32) {
    %c0_i32 = arith.constant 0 : i32
    %c0_i32_0 = arith.constant 0 : i32
    %c0_i32_1 = arith.constant 0 : i32
    return %arg0, %c0_i32, %c0_i32_0 : i32, i32, i32
  }
  func.func @transform_2(%arg0: i32) -> (i32, i32) {
    %c0_i32 = arith.constant 0 : i32
    %c0_i32_0 = arith.constant 0 : i32
    %c0_i32_1 = arith.constant 0 : i32
    return %c0_i32, %c0_i32_0 : i32, i32
  }
  func.func @transform_3(%arg0: i32) -> (i32, i32) {
    %c0_i32 = arith.constant 0 : i32
    %c0_i32_0 = arith.constant 0 : i32
    %c0_i32_1 = arith.constant 0 : i32
    return %c0_i32, %c0_i32_0 : i32, i32
  }
  func.func @transform_4(%arg0: i32) -> (i32, i32, i32) {
    %c0_i32 = arith.constant 0 : i32
    %c0_i32_0 = arith.constant 0 : i32
    %c0_i32_1 = arith.constant 0 : i32
    %c0_i32_2 = arith.constant 0 : i32
    return %c0_i32, %c0_i32_0, %c0_i32_1 : i32, i32, i32
  }
  func.func @transform_5(%arg0: i32) -> (i32, i32) {
    %c0_i32 = arith.constant 0 : i32
    %c0_i32_0 = arith.constant 0 : i32
    %c0_i32_1 = arith.constant 0 : i32
    return %c0_i32, %c0_i32_0 : i32, i32
  }
  func.func @transform_6(%arg0: i32) -> (i32, i32) {
    %c0_i32 = arith.constant 0 : i32
    %c0_i32_0 = arith.constant 0 : i32
    %c0_i32_1 = arith.constant 0 : i32
    return %c0_i32, %c0_i32_0 : i32, i32
  }
  func.func @transform_7(%arg0: i32) -> (i32, i32) {
    %c0_i32 = arith.constant 0 : i32
    %c0_i32_0 = arith.constant 0 : i32
    %c0_i32_1 = arith.constant 0 : i32
    return %c0_i32, %c0_i32_0 : i32, i32
  }
  func.func @transform_8(%arg0: i32) -> (i32, i32) {
    %c0_i32 = arith.constant 0 : i32
    %c0_i32_0 = arith.constant 0 : i32
    %c0_i32_1 = arith.constant 0 : i32
    return %c0_i32, %c0_i32_0 : i32, i32
  }
  func.func @transform_9(%arg0: i32) -> (i32, i32) {
    %c0_i32 = arith.constant 0 : i32
    %c0_i32_0 = arith.constant 0 : i32
    %c0_i32_1 = arith.constant 0 : i32
    return %c0_i32, %c0_i32_0 : i32, i32
  }
  func.func @transform_10(%arg0: i32) -> (i32, i32) {
    %c0_i32 = arith.constant 0 : i32
    %c0_i32_0 = arith.constant 0 : i32
    %c0_i32_1 = arith.constant 0 : i32
    return %c0_i32, %c0_i32_0 : i32, i32
  }
  func.func @transform_11(%arg0: i32) -> (i32, i32, i32) {
    %c0_i32 = arith.constant 0 : i32
    %c0_i32_0 = arith.constant 0 : i32
    %c0_i32_1 = arith.constant 0 : i32
    return %arg0, %c0_i32, %c0_i32_0 : i32, i32, i32
  }
}

</mosaic_0001>

<llo_original>
// kernel: tpu_custom_call.1
$region0: #{tpu_custom_call.1}
  #allocation0 [shape = 'u32[]', space=smem, size = 0x4, offset = 0x4, fixed_abs, tag = 'smem constant byte address 0x4 - core index']
  #allocation1 [shape = 'u32[144,128]{1,0:T(1,128)}', space=vmem, size = 0x12000, scoped, tag = 'internal scratch']
  #allocation2 [shape = 'bf16[22,128]{1,0:T(8,128)(2,1)}', space=vmem, size = 0x1800, scoped, tag = 'scratch operand']
  %s0 = inlined_call_operand.hbm [shape: bf16[2,16,128], index: 0, kind: input, shape index: {}]
  %s1 = inlined_call_operand.hbm [shape: f32[2,16,128], index: 1, kind: input, shape index: {}]
  %s2 = inlined_call_operand.hbm [shape: bf16[128,128], index: 2, kind: input, shape index: {}]
  %s3 = inlined_call_operand.vmem [shape: f32[1,128], index: 3, kind: input, shape index: {}]
  %s4 = inlined_call_operand.hbm [shape: bf16[7,128,128], index: 4, kind: input, shape index: {}]
  %s5 = inlined_call_operand.vmem [shape: f32[1,128], index: 5, kind: input, shape index: {}]
  %s6 = inlined_call_operand.vmem [shape: f32[1,128], index: 6, kind: input, shape index: {}]
  %s7 = inlined_call_operand.hbm [shape: bf16[128,128], index: 7, kind: input, shape index: {}]
  %s8 = inlined_call_operand.vmem [shape: f32[1,128], index: 8, kind: input, shape index: {}]
  %s9 = inlined_call_operand.hbm [shape: bf16[128,128], index: 9, kind: input, shape index: {}]
  %s10 = inlined_call_operand.vmem [shape: f32[1,128], index: 10, kind: input, shape index: {}]
  %s11 = inlined_call_operand.hbm [shape: f32[2,16,128], index: 11, kind: output, shape index: {}]
  %s12 = sld [smem:[#allocation0]]
  $region101: #{tpu_custom_call.1} parent=0
    _
  %s14 = ssub.s32 1, %s12
  %s15 = scalar_select 0, %s14, %s12
  $region1: #{tpu_custom_call.1} parent=0
    #allocation3 [shape = 'u8[8192]{0}', space=vmem, size = 0x2000, scoped, tag = 'input window, operand 0']
    #allocation4 [shape = 's32[2]{0}', space=sflag, size = 0x8, scoped, tag = 'scoped memory for tpu_custom_call.1']
    #allocation5 [shape = 's32[2]{0}', space=sflag, size = 0x8, scoped, tag = 'scoped memory for tpu_custom_call.1']
    #allocation6 [shape = 'u8[16384]{0}', space=vmem, size = 0x4000, scoped, tag = 'input window, operand 1']
    #allocation7 [shape = 's32[2]{0}', space=sflag, size = 0x8, scoped, tag = 'scoped memory for tpu_custom_call.1']
    #allocation8 [shape = 'u8[32768]{0}', space=vmem, size = 0x8000, scoped, tag = 'input window, operand 2, single buffered']
    #allocation9 [shape = 'u8[229376]{0}', space=vmem, size = 0x38000, scoped, tag = 'input window, operand 4, single buffered']
    #allocation10 [shape = 's32[1]{0}', space=sflag, size = 0x4, scoped, tag = 'scoped memory for tpu_custom_call.1']
    #allocation11 [shape = 'u8[32768]{0}', space=vmem, size = 0x8000, scoped, tag = 'input window, operand 7, single buffered']
    #allocation12 [shape = 'u8[32768]{0}', space=vmem, size = 0x8000, scoped, tag = 'input window, operand 9, single buffered']
    #allocation13 [shape = 's32[1]{0}', space=sflag, size = 0x4, scoped, tag = 'scoped memory for tpu_custom_call.1']
    #allocation14 [shape = 'u8[16384]{0}', space=vmem, size = 0x4000, scoped, tag = 'output window, operand 0']
    %16 = vsyncpa [#allocation4], 0
    %s17 = scalar_lea.sflag [#allocation4], 1
    %18 = vsyncpa %s17, 0
    %19 = vsyncpa [#allocation7], 0
    %s20 = scalar_lea.sflag [#allocation7], 1
    %21 = vsyncpa %s20, 0
    %22 = vsyncpa [#allocation10], 0
    %23 = vsyncpa [#allocation13], 0
    %24 = vsyncpa [#allocation5], 0
    %s25 = scalar_lea.sflag [#allocation5], 1
    %26 = vsyncpa %s25, 0
    loop: start=0, step=1, limit=4
    $region2: #{tpu_custom_call.1} parent=1 // loop_pre_header
      _
    $region3: #{tpu_custom_call.1} parent=1 // loop_header
      %s28 = sphi 0, %s32
      %p29 = scmp.ge.s32.totalorder %s28, 4
      %s38 = sphi 0, %s40
      %s41 = sphi 0, %s38
      %s42 = sphi 0, %s41
      %s58 = sphi 0, %s42
      %s64 = sphi 0, %s66
      %s67 = sphi 0, %s64
      %s68 = sphi 0, %s67
      %s84 = sphi 0, %s68
      %s88 = sphi 0, %s88
      %s90 = sphi 0, %s88
      %s91 = sphi 0, %s90
      %s105 = sphi 0, %s91
      %s109 = sphi 0, %s109
      %s111 = sphi 0, %s109
      %s112 = sphi 0, %s111
      %s126 = sphi 0, %s112
      %s130 = sphi 0, %s130
      %s132 = sphi 0, %s130
      %s133 = sphi 0, %s132
      %s147 = sphi 0, %s133
      %s151 = sphi 0, %s151
      %s153 = sphi 0, %s151
      %s154 = sphi 0, %s153
      %s168 = sphi 0, %s154
      %s172 = sphi 0, %s172
      %s174 = sphi 0, %s172
      %s175 = sphi 0, %s174
      %s189 = sphi 0, %s175
      %s193 = sphi 0, %s193
      %s195 = sphi 0, %s193
      %s196 = sphi 0, %s195
      %s210 = sphi 0, %s196
      %s214 = sphi 0, %s214
      %s216 = sphi 0, %s214
      %s217 = sphi 0, %s216
      %s231 = sphi 0, %s217
      %s235 = sphi 0, %s235
      %s237 = sphi 0, %s235
      %s238 = sphi 0, %s237
      %s252 = sphi 0, %s238
      %s256 = sphi 0, %s256
      %s258 = sphi 0, %s256
      %s259 = sphi 0, %s258
      %s273 = sphi 0, %s259
      %s279 = sphi 0, %s281
      %s282 = sphi 0, %s279
      %s283 = sphi 0, %s282
      %s299 = sphi 0, %s283
    $region4: #{tpu_custom_call.1} parent=1 // loop_header_branch
      %31 = sbr.rel (%p29) target = $region8
    $region5: #{tpu_custom_call.1} parent=1 // loop_body
      %s33 = ssub.s32 %s28, 1
      %s34 = ssub.s32 %s28, 2
      %s35 = sadd.s32 %s28, 1
      %s36 = ssub.s32 %s28, %s35
      %p37 = scmp.eq.s32.totalorder %s36, 0
      %s39 = sadd.s32 %s38, 1
      %s40 = scalar_select %p37, %s38, %s39
      %p43 = pneg %p37
      %p44 = scmp.eq.s32.totalorder %s28, 1
      %p45 = por %p43, %p44
      %p46 = scmp.ne.s32.totalorder %s38, %s41
      %p47 = scmp.eq.s32.totalorder %s28, 0
      %p48 = por %p46, %p47
      %p49 = scmp.ne.s32.totalorder %s38, %s41
      %p50 = scmp.eq.s32.totalorder %s33, 1
      %p51 = por %p49, %p50
      %p52 = scmp.ne.s32.totalorder %s41, %s42
      %p53 = scmp.eq.s32.totalorder %s33, 0
      %p54 = por %p52, %p53
      %p55 = scmp.ne.s32.totalorder %s41, %s42
      %p56 = scmp.eq.s32.totalorder %s34, 1
      %p57 = por %p55, %p56
      %p59 = scmp.ne.s32.totalorder %s42, %s58
      %p60 = scmp.eq.s32.totalorder %s34, 0
      %p61 = por %p59, %p60
      %s62 = ssub.s32 %s28, %s35
      %p63 = scmp.eq.s32.totalorder %s62, 0
      %s65 = sadd.s32 %s64, 1
      %s66 = scalar_select %p63, %s64, %s65
      %p69 = pneg %p63
      %p70 = scmp.eq.s32.totalorder %s28, 1
      %p71 = por %p69, %p70
      %p72 = scmp.ne.s32.totalorder %s64, %s67
      %p73 = scmp.eq.s32.totalorder %s28, 0
      %p74 = por %p72, %p73
      %p75 = scmp.ne.s32.totalorder %s64, %s67
      %p76 = scmp.eq.s32.totalorder %s33, 1
      %p77 = por %p75, %p76
      %p78 = scmp.ne.s32.totalorder %s67, %s68
      %p79 = scmp.eq.s32.totalorder %s33, 0
      %p80 = por %p78, %p79
      %p81 = scmp.ne.s32.totalorder %s67, %s68
      %p82 = scmp.eq.s32.totalorder %s34, 1
      %p83 = por %p81, %p82
      %p85 = scmp.ne.s32.totalorder %s68, %s84
      %p86 = scmp.eq.s32.totalorder %s34, 0
      %p87 = por %p85, %p86
      %s89 = sadd.s32 %s88, 1
      %p92 = scmp.eq.s32.totalorder %s28, 1
      %p93 = scmp.ne.s32.totalorder %s88, %s90
      %p94 = scmp.eq.s32.totalorder %s28, 0
      %p95 = por %p93, %p94
      %p96 = scmp.ne.s32.totalorder %s88, %s90
      %p97 = scmp.eq.s32.totalorder %s33, 1
      %p98 = por %p96, %p97
      %p99 = scmp.ne.s32.totalorder %s90, %s91
      %p100 = scmp.eq.s32.totalorder %s33, 0
      %p101 = por %p99, %p100
      %p102 = scmp.ne.s32.totalorder %s90, %s91
      %p103 = scmp.eq.s32.totalorder %s34, 1
      %p104 = por %p102, %p103
      %p106 = scmp.ne.s32.totalorder %s91, %s105
      %p107 = scmp.eq.s32.totalorder %s34, 0
      %p108 = por %p106, %p107
      %s110 = sadd.s32 %s109, 1
      %p113 = scmp.eq.s32.totalorder %s28, 1
      %p114 = scmp.ne.s32.totalorder %s109, %s111
      %p115 = scmp.eq.s32.totalorder %s28, 0
      %p116 = por %p114, %p115
      %p117 = scmp.ne.s32.totalorder %s109, %s111
      %p118 = scmp.eq.s32.totalorder %s33, 1
      %p119 = por %p117, %p118
      %p120 = scmp.ne.s32.totalorder %s111, %s112
      %p121 = scmp.eq.s32.totalorder %s33, 0
      %p122 = por %p120, %p121
      %p123 = scmp.ne.s32.totalorder %s111, %s112
      %p124 = scmp.eq.s32.totalorder %s34, 1
      %p125 = por %p123, %p124
      %p127 = scmp.ne.s32.totalorder %s112, %s126
      %p128 = scmp.eq.s32.totalorder %s34, 0
      %p129 = por %p127, %p128
      %s131 = sadd.s32 %s130, 1
      %p134 = scmp.eq.s32.totalorder %s28, 1
      %p135 = scmp.ne.s32.totalorder %s130, %s132
      %p136 = scmp.eq.s32.totalorder %s28, 0
      %p137 = por %p135, %p136
      %p138 = scmp.ne.s32.totalorder %s130, %s132
      %p139 = scmp.eq.s32.totalorder %s33, 1
      %p140 = por %p138, %p139
      %p141 = scmp.ne.s32.totalorder %s132, %s133
      %p142 = scmp.eq.s32.totalorder %s33, 0
      %p143 = por %p141, %p142
      %p144 = scmp.ne.s32.totalorder %s132, %s133
      %p145 = scmp.eq.s32.totalorder %s34, 1
      %p146 = por %p144, %p145
      %p148 = scmp.ne.s32.totalorder %s133, %s147
      %p149 = scmp.eq.s32.totalorder %s34, 0
      %p150 = por %p148, %p149
      %s152 = sadd.s32 %s151, 1
      %p155 = scmp.eq.s32.totalorder %s28, 1
      %p156 = scmp.ne.s32.totalorder %s151, %s153
      %p157 = scmp.eq.s32.totalorder %s28, 0
      %p158 = por %p156, %p157
      %p159 = scmp.ne.s32.totalorder %s151, %s153
      %p160 = scmp.eq.s32.totalorder %s33, 1
      %p161 = por %p159, %p160
      %p162 = scmp.ne.s32.totalorder %s153, %s154
      %p163 = scmp.eq.s32.totalorder %s33, 0
      %p164 = por %p162, %p163
      %p165 = scmp.ne.s32.totalorder %s153, %s154
      %p166 = scmp.eq.s32.totalorder %s34, 1
      %p167 = por %p165, %p166
      %p169 = scmp.ne.s32.totalorder %s154, %s168
      %p170 = scmp.eq.s32.totalorder %s34, 0
      %p171 = por %p169, %p170
      %s173 = sadd.s32 %s172, 1
      %p176 = scmp.eq.s32.totalorder %s28, 1
      %p177 = scmp.ne.s32.totalorder %s172, %s174
      %p178 = scmp.eq.s32.totalorder %s28, 0
      %p179 = por %p177, %p178
      %p180 = scmp.ne.s32.totalorder %s172, %s174
      %p181 = scmp.eq.s32.totalorder %s33, 1
      %p182 = por %p180, %p181
      %p183 = scmp.ne.s32.totalorder %s174, %s175
      %p184 = scmp.eq.s32.totalorder %s33, 0
      %p185 = por %p183, %p184
      %p186 = scmp.ne.s32.totalorder %s174, %s175
      %p187 = scmp.eq.s32.totalorder %s34, 1
      %p188 = por %p186, %p187
      %p190 = scmp.ne.s32.totalorder %s175, %s189
      %p191 = scmp.eq.s32.totalorder %s34, 0
      %p192 = por %p190, %p191
      %s194 = sadd.s32 %s193, 1
      %p197 = scmp.eq.s32.totalorder %s28, 1
      %p198 = scmp.ne.s32.totalorder %s193, %s195
      %p199 = scmp.eq.s32.totalorder %s28, 0
      %p200 = por %p198, %p199
      %p201 = scmp.ne.s32.totalorder %s193, %s195
      %p202 = scmp.eq.s32.totalorder %s33, 1
      %p203 = por %p201, %p202
      %p204 = scmp.ne.s32.totalorder %s195, %s196
      %p205 = scmp.eq.s32.totalorder %s33, 0
      %p206 = por %p204, %p205
      %p207 = scmp.ne.s32.totalorder %s195, %s196
      %p208 = scmp.eq.s32.totalorder %s34, 1
      %p209 = por %p207, %p208
      %p211 = scmp.ne.s32.totalorder %s196, %s210
      %p212 = scmp.eq.s32.totalorder %s34, 0
      %p213 = por %p211, %p212
      %s215 = sadd.s32 %s214, 1
      %p218 = scmp.eq.s32.totalorder %s28, 1
      %p219 = scmp.ne.s32.totalorder %s214, %s216
      %p220 = scmp.eq.s32.totalorder %s28, 0
      %p221 = por %p219, %p220
      %p222 = scmp.ne.s32.totalorder %s214, %s216
      %p223 = scmp.eq.s32.totalorder %s33, 1
      %p224 = por %p222, %p223
      %p225 = scmp.ne.s32.totalorder %s216, %s217
      %p226 = scmp.eq.s32.totalorder %s33, 0
      %p227 = por %p225, %p226
      %p228 = scmp.ne.s32.totalorder %s216, %s217
      %p229 = scmp.eq.s32.totalorder %s34, 1
      %p230 = por %p228, %p229
      %p232 = scmp.ne.s32.totalorder %s217, %s231
      %p233 = scmp.eq.s32.totalorder %s34, 0
      %p234 = por %p232, %p233
      %s236 = sadd.s32 %s235, 1
      %p239 = scmp.eq.s32.totalorder %s28, 1
      %p240 = scmp.ne.s32.totalorder %s235, %s237
      %p241 = scmp.eq.s32.totalorder %s28, 0
      %p242 = por %p240, %p241
      %p243 = scmp.ne.s32.totalorder %s235, %s237
      %p244 = scmp.eq.s32.totalorder %s33, 1
      %p245 = por %p243, %p244
      %p246 = scmp.ne.s32.totalorder %s237, %s238
      %p247 = scmp.eq.s32.totalorder %s33, 0
      %p248 = por %p246, %p247
      %p249 = scmp.ne.s32.totalorder %s237, %s238
      %p250 = scmp.eq.s32.totalorder %s34, 1
      %p251 = por %p249, %p250
      %p253 = scmp.ne.s32.totalorder %s238, %s252
      %p254 = scmp.eq.s32.totalorder %s34, 0
      %p255 = por %p253, %p254
      %s257 = sadd.s32 %s256, 1
      %p260 = scmp.eq.s32.totalorder %s28, 1
      %p261 = scmp.ne.s32.totalorder %s256, %s258
      %p262 = scmp.eq.s32.totalorder %s28, 0
      %p263 = por %p261, %p262
      %p264 = scmp.ne.s32.totalorder %s256, %s258
      %p265 = scmp.eq.s32.totalorder %s33, 1
      %p266 = por %p264, %p265
      %p267 = scmp.ne.s32.totalorder %s258, %s259
      %p268 = scmp.eq.s32.totalorder %s33, 0
      %p269 = por %p267, %p268
      %p270 = scmp.ne.s32.totalorder %s258, %s259
      %p271 = scmp.eq.s32.totalorder %s34, 1
      %p272 = por %p270, %p271
      %p274 = scmp.ne.s32.totalorder %s259, %s273
      %p275 = scmp.eq.s32.totalorder %s34, 0
      %p276 = por %p274, %p275
      %s277 = ssub.s32 %s28, %s35
      %p278 = scmp.eq.s32.totalorder %s277, 0
      %s280 = sadd.s32 %s279, 1
      %s281 = scalar_select %p278, %s279, %s280
      %p284 = pneg %p278
      %p285 = scmp.eq.s32.totalorder %s28, 1
      %p286 = por %p284, %p285
      %p287 = scmp.ne.s32.totalorder %s279, %s282
      %p288 = scmp.eq.s32.totalorder %s28, 0
      %p289 = por %p287, %p288
      %p290 = scmp.ne.s32.totalorder %s279, %s282
      %p291 = scmp.eq.s32.totalorder %s33, 1
      %p292 = por %p290, %p291
      %p293 = scmp.ne.s32.totalorder %s282, %s283
      %p294 = scmp.eq.s32.totalorder %s33, 0
      %p295 = por %p293, %p294
      %p296 = scmp.ne.s32.totalorder %s282, %s283
      %p297 = scmp.eq.s32.totalorder %s34, 1
      %p298 = por %p296, %p297
      %p300 = scmp.ne.s32.totalorder %s283, %s299
      %p301 = scmp.eq.s32.totalorder %s34, 0
      %p302 = por %p300, %p301
      %p303 = scmp.le.s32.totalorder 1, %s28
      %p304 = scmp.lt.s32.totalorder %s28, 3
      %p305 = pnand %p303, %p304
      %p306 = pneg %p305
      // Predicated region
      $region9: #{tpu_custom_call.1} parent=5 // pred_check
        _
      $region10: #{tpu_custom_call.1} parent=5 // pred_check_branch
        %308 = sbr.rel (%p305) target = $region12
      $region11: #{tpu_custom_call.1} parent=5 // pred_region
        %s309 = ssub.s32 %s28, 1
        // Predicated region
        $region13: #{tpu_custom_call.1} parent=11 // pred_check
          %p310 = pneg %p101
        $region14: #{tpu_custom_call.1} parent=11 // pred_check_branch
          %312 = sbr.rel (%p310) target = $region16
        $region15: #{tpu_custom_call.1} parent=11 // pred_region
          %s314 = ssub.s32 1024, 1024
          %315 = vsyncadd [#allocation7], %s314
          %s316 = sshll.u32 [#allocation8], 4
          %s317 = int_to_ptr.vmem [resolvable:$true] %s316
          %322 = dma.hbm_to_vmem [thread:$0]  %s2, 1024, %s317, [#allocation7], 64, 64, 4
        $region16: #{tpu_custom_call.1} parent=11 // pred_fallthru
          _
        // Predicated region
        $region17: #{tpu_custom_call.1} parent=11 // pred_check
          %p323 = pneg %p122
        $region18: #{tpu_custom_call.1} parent=11 // pred_check_branch
          %325 = sbr.rel (%p323) target = $region20
        $region19: #{tpu_custom_call.1} parent=11 // pred_region
          _
        $region20: #{tpu_custom_call.1} parent=11 // pred_fallthru
          _
        // Predicated region
        $region21: #{tpu_custom_call.1} parent=11 // pred_check
          %p326 = pneg %p143
        $region22: #{tpu_custom_call.1} parent=11 // pred_check_branch
          %328 = sbr.rel (%p326) target = $region24
        $region23: #{tpu_custom_call.1} parent=11 // pred_region
          %s330 = ssub.s32 7168, 7168
          %331 = vsyncadd [#allocation10], %s330
          %s332 = sshll.u32 [#allocation9], 4
          %s333 = int_to_ptr.vmem [resolvable:$true] %s332
          %338 = dma.hbm_to_vmem [thread:$0]  %s4, 7168, %s333, [#allocation10], 64, 64, 4
        $region24: #{tpu_custom_call.1} parent=11 // pred_fallthru
          _
        // Predicated region
        $region25: #{tpu_custom_call.1} parent=11 // pred_check
          %p339 = pneg %p164
        $region26: #{tpu_custom_call.1} parent=11 // pred_check_branch
          %341 = sbr.rel (%p339) target = $region28
        $region27: #{tpu_custom_call.1} parent=11 // pred_region
          _
        $region28: #{tpu_custom_call.1} parent=11 // pred_fallthru
          _
        // Predicated region
        $region29: #{tpu_custom_call.1} parent=11 // pred_check
          %p342 = pneg %p185
        $region30: #{tpu_custom_call.1} parent=11 // pred_check_branch
          %344 = sbr.rel (%p342) target = $region32
        $region31: #{tpu_custom_call.1} parent=11 // pred_region
          _
        $region32: #{tpu_custom_call.1} parent=11 // pred_fallthru
          _
        // Predicated region
        $region33: #{tpu_custom_call.1} parent=11 // pred_check
          %p345 = pneg %p206
        $region34: #{tpu_custom_call.1} parent=11 // pred_check_branch
          %347 = sbr.rel (%p345) target = $region36
        $region35: #{tpu_custom_call.1} parent=11 // pred_region
          %s349 = ssub.s32 1024, 1024
          %350 = vsyncadd [#allocation10], %s349
          %s351 = sshll.u32 [#allocation11], 4
          %s352 = int_to_ptr.vmem [resolvable:$true] %s351
          %357 = dma.hbm_to_vmem [thread:$0]  %s7, 1024, %s352, [#allocation10], 64, 64, 4
        $region36: #{tpu_custom_call.1} parent=11 // pred_fallthru
          _
        // Predicated region
        $region37: #{tpu_custom_call.1} parent=11 // pred_check
          %p358 = pneg %p227
        $region38: #{tpu_custom_call.1} parent=11 // pred_check_branch
          %360 = sbr.rel (%p358) target = $region40
        $region39: #{tpu_custom_call.1} parent=11 // pred_region
          _
        $region40: #{tpu_custom_call.1} parent=11 // pred_fallthru
          _
        // Predicated region
        $region41: #{tpu_custom_call.1} parent=11 // pred_check
          %p361 = pneg %p248
        $region42: #{tpu_custom_call.1} parent=11 // pred_check_branch
          %363 = sbr.rel (%p361) target = $region44
        $region43: #{tpu_custom_call.1} parent=11 // pred_region
          %s365 = ssub.s32 1024, 1024
          %366 = vsyncadd [#allocation13], %s365
          %s367 = sshll.u32 [#allocation12], 4
          %s368 = int_to_ptr.vmem [resolvable:$true] %s367
          %373 = dma.hbm_to_vmem [thread:$0]  %s9, 1024, %s368, [#allocation13], 64, 64, 4
        $region44: #{tpu_custom_call.1} parent=11 // pred_fallthru
          _
        // Predicated region
        $region45: #{tpu_custom_call.1} parent=11 // pred_check
          %p374 = pneg %p269
        $region46: #{tpu_custom_call.1} parent=11 // pred_check_branch
          %376 = sbr.rel (%p374) target = $region48
        $region47: #{tpu_custom_call.1} parent=11 // pred_region
          _
        $region48: #{tpu_custom_call.1} parent=11 // pred_fallthru
          _
      $region12: #{tpu_custom_call.1} parent=5 // pred_fallthru
        _
      %p377 = scmp.lt.s32.totalorder %s28, 2
      // Predicated region
      $region49: #{tpu_custom_call.1} parent=5 // pred_check
        %p378 = pneg %p377
      $region50: #{tpu_custom_call.1} parent=5 // pred_check_branch
        %380 = sbr.rel (%p378) target = $region52
      $region51: #{tpu_custom_call.1} parent=5 // pred_region
        // Predicated region
        $region53: #{tpu_custom_call.1} parent=51 // pred_check
          %p381 = pneg %p48
        $region54: #{tpu_custom_call.1} parent=51 // pred_check_branch
          %383 = sbr.rel (%p381) target = $region56
        $region55: #{tpu_custom_call.1} parent=51 // pred_region
          %s384 = sand.u32 %s38, 1
          %s385 = scalar_lea.sflag [#allocation4], %s384
          %s386 = sand.u32 %s38, 1
          %s387 = smul.addr %s386, 8
          %s388 = scalar_lea.vmem [#allocation3], %s387
          %s390 = ssub.s32 128, 128
          %391 = vsyncadd %s385, %s390
          %s392 = smul.addr %s28, 2
          %s393 = smul.addr %s392, 64
          %s394 = scalar_lea.hbm %s0, %s393
          %s395 = sshll.u32 %s388, 4
          %s396 = int_to_ptr.vmem [resolvable:$true] %s395
          %401 = dma.hbm_to_vmem [thread:$0]  %s394, 128, %s396, %s385, 64, 64, 4
        $region56: #{tpu_custom_call.1} parent=51 // pred_fallthru
          _
        // Predicated region
        $region57: #{tpu_custom_call.1} parent=51 // pred_check
          %p402 = pneg %p74
        $region58: #{tpu_custom_call.1} parent=51 // pred_check_branch
          %404 = sbr.rel (%p402) target = $region60
        $region59: #{tpu_custom_call.1} parent=51 // pred_region
          %s405 = sand.u32 %s28, 1
          %s406 = scalar_lea.sflag [#allocation7], %s405
          %s407 = sand.u32 %s64, 1
          %s408 = smul.addr %s407, 16
          %s409 = scalar_lea.vmem [#allocation6], %s408
          %s411 = ssub.s32 256, 256
          %412 = vsyncadd %s406, %s411
          %s413 = smul.addr %s28, 2
          %s414 = smul.addr %s413, 128
          %s415 = scalar_lea.hbm %s1, %s414
          %s416 = sshll.u32 %s409, 4
          %s417 = int_to_ptr.vmem [resolvable:$true] %s416
          %422 = dma.hbm_to_vmem [thread:$0]  %s415, 256, %s417, %s406, 128, 128, 8
        $region60: #{tpu_custom_call.1} parent=51 // pred_fallthru
          _
      $region52: #{tpu_custom_call.1} parent=5 // pred_fallthru
        _
      %p423 = scmp.le.s32.totalorder 1, %s28
      %p424 = scmp.lt.s32.totalorder %s28, 3
      %p425 = pnand %p423, %p424
      %p426 = pneg %p425
      // Predicated region
      $region61: #{tpu_custom_call.1} parent=5 // pred_check
        _
      $region62: #{tpu_custom_call.1} parent=5 // pred_check_branch
        %428 = sbr.rel (%p425) target = $region64
      $region63: #{tpu_custom_call.1} parent=5 // pred_region
        %s429 = ssub.s32 %s28, 1
        %s430 = sand.u32 %s41, 1
        %s431 = scalar_lea.sflag [#allocation4], %s430
        %s432 = sand.u32 %s41, 1
        %s433 = smul.addr %s432, 8
        %s434 = scalar_lea.vmem [#allocation3], %s433
        // Predicated region
        $region65: #{tpu_custom_call.1} parent=63 // pred_check
          %p435 = pneg %p54
        $region66: #{tpu_custom_call.1} parent=63 // pred_check_branch
          %437 = sbr.rel (%p435) target = $region68
        $region67: #{tpu_custom_call.1} parent=63 // pred_region
          %438 = dma.done %s431, 128
        $region68: #{tpu_custom_call.1} parent=63 // pred_fallthru
          _
        %s439 = sand.u32 %s33, 1
        %s440 = scalar_lea.sflag [#allocation7], %s439
        %s441 = sand.u32 %s67, 1
        %s442 = smul.addr %s441, 16
        %s443 = scalar_lea.vmem [#allocation6], %s442
        // Predicated region
        $region69: #{tpu_custom_call.1} parent=63 // pred_check
          %p444 = pneg %p80
        $region70: #{tpu_custom_call.1} parent=63 // pred_check_branch
          %446 = sbr.rel (%p444) target = $region72
        $region71: #{tpu_custom_call.1} parent=63 // pred_region
          %447 = dma.done %s440, 256
        $region72: #{tpu_custom_call.1} parent=63 // pred_fallthru
          _
        // Predicated region
        $region73: #{tpu_custom_call.1} parent=63 // pred_check
          %p448 = pneg %p101
        $region74: #{tpu_custom_call.1} parent=63 // pred_check_branch
          %450 = sbr.rel (%p448) target = $region76
        $region75: #{tpu_custom_call.1} parent=63 // pred_region
          %451 = dma.done [#allocation7], 1024
        $region76: #{tpu_custom_call.1} parent=63 // pred_fallthru
          _
        // Predicated region
        $region77: #{tpu_custom_call.1} parent=63 // pred_check
          %p452 = pneg %p143
        $region78: #{tpu_custom_call.1} parent=63 // pred_check_branch
          %454 = sbr.rel (%p452) target = $region80
        $region79: #{tpu_custom_call.1} parent=63 // pred_region
          %455 = dma.done [#allocation10], 7168
        $region80: #{tpu_custom_call.1} parent=63 // pred_fallthru
          _
        // Predicated region
        $region81: #{tpu_custom_call.1} parent=63 // pred_check
          %p456 = pneg %p206
        $region82: #{tpu_custom_call.1} parent=63 // pred_check_branch
          %458 = sbr.rel (%p456) target = $region84
        $region83: #{tpu_custom_call.1} parent=63 // pred_region
          %459 = dma.done [#allocation10], 1024
        $region84: #{tpu_custom_call.1} parent=63 // pred_fallthru
          _
        // Predicated region
        $region85: #{tpu_custom_call.1} parent=63 // pred_check
          %p460 = pneg %p248
        $region86: #{tpu_custom_call.1} parent=63 // pred_check_branch
          %462 = sbr.rel (%p460) target = $region88
        $region87: #{tpu_custom_call.1} parent=63 // pred_region
          %463 = dma.done [#allocation13], 1024
        $region88: #{tpu_custom_call.1} parent=63 // pred_fallthru
          _
        %s464 = sand.u32 %s41, 1
        %s465 = scalar_lea.sflag [#allocation4], %s464
        %s466 = sand.u32 %s41, 1
        %s467 = smul.addr %s466, 8
        %s468 = scalar_lea.vmem [#allocation3], %s467
        %p469 = pneg %p54
        %p470 = pneg %p51
        %s471 = sand.u32 %s33, 1
        %s472 = scalar_lea.sflag [#allocation7], %s471
        %s473 = sand.u32 %s67, 1
        %s474 = smul.addr %s473, 16
        %s475 = scalar_lea.vmem [#allocation6], %s474
        %p476 = pneg %p80
        %p477 = pneg %p77
        %p478 = pneg %p101
        %p479 = pneg %p98
        %p480 = pneg %p122
        %p481 = pneg %p119
        %p482 = pneg %p143
        %p483 = pneg %p140
        %p484 = pneg %p164
        %p485 = pneg %p161
        %p486 = pneg %p185
        %p487 = pneg %p182
        %p488 = pneg %p206
        %p489 = pneg %p203
        %p490 = pneg %p227
        %p491 = pneg %p224
        %p492 = pneg %p248
        %p493 = pneg %p245
        %p494 = pneg %p269
        %p495 = pneg %p266
        %p496 = pneg %p295
        %p497 = pneg %p292
        %s498 = sand.u32 %s282, 1
        %s499 = scalar_lea.sflag [#allocation5], %s498
        %s500 = sand.u32 %s282, 1
        %s501 = smul.addr %s500, 16
        %s502 = scalar_lea.vmem [#allocation14], %s501
        %v504 = vld [vmem:[%s434] sm:$0xf]
        %v505 = vld [vmem:[%s434 + $0x4] sm:$0xf]
        %v506 = vld [vmem:[#allocation8] sm:$0xf]
        %v507 = vld [vmem:[#allocation8 + $0x4] sm:$0xf]
        %v508 = vld [vmem:[#allocation8 + $0x8] sm:$0xf]
        %v509 = vld [vmem:[#allocation8 + $0xc] sm:$0xf]
        %v510 = vld [vmem:[#allocation8 + $0x10] sm:$0xf]
        %v511 = vld [vmem:[#allocation8 + $0x14] sm:$0xf]
        %v512 = vld [vmem:[#allocation8 + $0x18] sm:$0xf]
        %v513 = vld [vmem:[#allocation8 + $0x1c] sm:$0xf]
        %v514 = vld [vmem:[#allocation8 + $0x20] sm:$0xf]
        %v515 = vld [vmem:[#allocation8 + $0x24] sm:$0xf]
        %v516 = vld [vmem:[#allocation8 + $0x28] sm:$0xf]
        %v517 = vld [vmem:[#allocation8 + $0x2c] sm:$0xf]
        %v518 = vld [vmem:[#allocation8 + $0x30] sm:$0xf]
        %v519 = vld [vmem:[#allocation8 + $0x34] sm:$0xf]
        %v520 = vld [vmem:[#allocation8 + $0x38] sm:$0xf]
        %v521 = vld [vmem:[#allocation8 + $0x3c] sm:$0xf]
        %v522 = vld [vmem:[%s3] sm:$0x1]
        %v524 = vlaneseq
        %v525 = vshrl.u32 %v524, 7
        %v526 = vsub.s32 0, %v525
        %v527 = vrot.slane %v522, %v526
        %v531 = vunpack.c.l.b16 %v504
        %v532 = vunpack.c.l.b16 %v505
        %v533 = vpack.c.b16 %v532, %v531
        %v551 = vunpack.c.l.b16 %v506
        %v552 = vunpack.c.l.b16 %v507
        %v553 = vunpack.c.l.b16 %v508
        %v554 = vunpack.c.l.b16 %v509
        %v555 = vunpack.c.l.b16 %v510
        %v556 = vunpack.c.l.b16 %v511
        %v557 = vunpack.c.l.b16 %v512
        %v558 = vunpack.c.l.b16 %v513
        %v559 = vunpack.c.l.b16 %v514
        %v560 = vunpack.c.l.b16 %v515
        %v561 = vunpack.c.l.b16 %v516
        %v562 = vunpack.c.l.b16 %v517
        %v563 = vunpack.c.l.b16 %v518
        %v564 = vunpack.c.l.b16 %v519
        %v565 = vunpack.c.l.b16 %v520
        %v566 = vunpack.c.l.b16 %v521
        %v567 = vpack.c.b16 %v552, %v551
        %v568 = vpack.c.b16 %v554, %v553
        %v569 = vpack.c.b16 %v556, %v555
        %v570 = vpack.c.b16 %v558, %v557
        %v571 = vpack.c.b16 %v560, %v559
        %v572 = vpack.c.b16 %v562, %v561
        %v573 = vpack.c.b16 %v564, %v563
        %v574 = vpack.c.b16 %v566, %v565
        %583 = vmatprep.subr.bf16.mxu0 0
        %584 = vmatpush1.bf16.msra.mxu0 %v574
        %585 = vmatprep.subr.bf16.mxu0 0
        %586 = vmatpush1.bf16.msra.mxu0 %v573
        %587 = vmatprep.subr.bf16.mxu0 0
        %588 = vmatpush1.bf16.msra.mxu0 %v572
        %589 = vmatprep.subr.bf16.mxu0 0
        %590 = vmatpush1.bf16.msra.mxu0 %v571
        %591 = vmatprep.subr.bf16.mxu0 0
        %592 = vmatpush1.bf16.msra.mxu0 %v570
        %593 = vmatprep.subr.bf16.mxu0 0
        %594 = vmatpush1.bf16.msra.mxu0 %v569
        %595 = vmatprep.subr.bf16.mxu0 0
        %596 = vmatpush1.bf16.msra.mxu0 %v568
        %597 = vmatprep.subr.bf16.mxu0 0
        %598 = vmatpush1.bf16.msra.mxu0 %v567
        %599 = vmatprep.subr.bf16.mxu0 0
        %600 = vmatpush2.bf16.msra.mxu0 0
        %601 = vmatprep.subr.bf16.mxu0 0
        %602 = vmatpush2.bf16.msra.mxu0 0
        %603 = vmatprep.subr.bf16.mxu0 0
        %604 = vmatpush2.bf16.msra.mxu0 0
        %605 = vmatprep.subr.bf16.mxu0 0
        %606 = vmatpush2.bf16.msra.mxu0 0
        %607 = vmatprep.subr.bf16.mxu0 0
        %608 = vmatpush2.bf16.msra.mxu0 0
        %609 = vmatprep.subr.bf16.mxu0 0
        %610 = vmatpush2.bf16.msra.mxu0 0
        %611 = vmatprep.subr.bf16.mxu0 0
        %612 = vmatpush2.bf16.msra.mxu0 0
        %613 = vmatprep.subr.bf16.mxu0 0
        %614 = vmatpush2.bf16.msra.mxu0 0
        %615 = vmatprep.mubr.bf16.mxu0 0
        %616 = vmatmul.mubr.bf16.gmra.mxu0 %v533
        %v617 = vpop.f32.mrf.mxu0
        %v618 = vadd.f32 %v527, %v617
        %v619 = vpop.f32.mrf.mxu0
        %v620 = vpop.f32.mrf.mxu0
        %v621 = vadd.f32 %v527, %v620
        %v622 = vpop.f32.mrf.mxu0
        %623 = vdwg.mxu0
        %624 = vst [vmem:[#allocation2] sm:$0xf] 0
        %625 = vst [vmem:[#allocation2 + $0x4] sm:$0xf] 0
        %626 = vst [vmem:[#allocation2 + $0x8] sm:$0x7] 0
        %v627 = vpack.c.bf16 %v621, %v618
        %v629 = vunpack.c.l.b16 %v627
        %v630 = vunpack.c.h.b16 %v627
        %v631 = vpack.c.b16 %v629, %v629
        %v632 = vpack.c.b16 %v630, %v630
        %vm633 = vsmask.f32 1280
        %vm634 = vsmask.f32 5392
        %vm635 = vmor %vm633, %vm634
        %v637 = vshrl.u32 %v631, 16
        %v639 = vrot.slane %v637, 6
        %v640 = vshll.u32 %v631, 16
        %v642 = vrot.slane %v640, 7
        %v643 = vor.u32 %v639, %v642
        %v644 = vrot.slane %v643, 4
        %v646 = vshrl.u32 %v632, 16
        %v648 = vrot.slane %v646, 6
        %v649 = vshll.u32 %v632, 16
        %v651 = vrot.slane %v649, 7
        %v652 = vor.u32 %v648, %v651
        %v653 = vsel %vm635, %v644, %v652
        %v654 = vrot.slane %v652, 4
        %vm658 = vcmask 1043457
        %vm659 = vsmask.f32 7942
        %vm660 = vmand %vm658, %vm659
        %v661 = vld [vmem:[#allocation2] sm:$0xe]
        %v662 = vsel %vm660, %v643, %v661
        %663 = vst [vmem:[#allocation2] sm:$0xe] %v662
        %664 = vst [vmem:[#allocation2 + $0x4] sm:$0xf] %v653
        %vm665 = vcmask 1041408
        %vm666 = vmand %vm665, %vm633
        %v667 = vld [vmem:[#allocation2 + $0x8] sm:$0x3]
        %v668 = vsel %vm666, %v654, %v667
        %669 = vst [vmem:[#allocation2 + $0x8] sm:$0x3] %v668
        %v670 = vld [vmem:[#allocation2] sm:$0xf]
        %v671 = vld [vmem:[#allocation2 + $0x4] sm:$0xf]
        %v672 = vld [vmem:[#allocation9] sm:$0xf]
        %v673 = vld [vmem:[#allocation9 + $0x4] sm:$0xf]
        %v674 = vld [vmem:[#allocation9 + $0x8] sm:$0xf]
        %v675 = vld [vmem:[#allocation9 + $0xc] sm:$0xf]
        %v676 = vld [vmem:[#allocation9 + $0x10] sm:$0xf]
        %v677 = vld [vmem:[#allocation9 + $0x14] sm:$0xf]
        %v678 = vld [vmem:[#allocation9 + $0x18] sm:$0xf]
        %v679 = vld [vmem:[#allocation9 + $0x1c] sm:$0xf]
        %v680 = vld [vmem:[#allocation9 + $0x20] sm:$0xf]
        %v681 = vld [vmem:[#allocation9 + $0x24] sm:$0xf]
        %v682 = vld [vmem:[#allocation9 + $0x28] sm:$0xf]
        %v683 = vld [vmem:[#allocation9 + $0x2c] sm:$0xf]
        %v684 = vld [vmem:[#allocation9 + $0x30] sm:$0xf]
        %v685 = vld [vmem:[#allocation9 + $0x34] sm:$0xf]
        %v686 = vld [vmem:[#allocation9 + $0x38] sm:$0xf]
        %v687 = vld [vmem:[#allocation9 + $0x3c] sm:$0xf]
        %v688 = vld [vmem:[#allocation2 + $0x8] sm:$0x1]
        %s689 = scalar_lea.vmem [#allocation9], 64
        %v690 = vld [vmem:[%s689] sm:$0xf]
        %v691 = vld [vmem:[%s689 + $0x4] sm:$0xf]
        %v692 = vld [vmem:[%s689 + $0x8] sm:$0xf]
        %v693 = vld [vmem:[%s689 + $0xc] sm:$0xf]
        %v694 = vld [vmem:[%s689 + $0x10] sm:$0xf]
        %v695 = vld [vmem:[%s689 + $0x14] sm:$0xf]
        %v696 = vld [vmem:[%s689 + $0x18] sm:$0xf]
        %v697 = vld [vmem:[%s689 + $0x1c] sm:$0xf]
        %v698 = vld [vmem:[%s689 + $0x20] sm:$0xf]
        %v699 = vld [vmem:[%s689 + $0x24] sm:$0xf]
        %v700 = vld [vmem:[%s689 + $0x28] sm:$0xf]
        %v701 = vld [vmem:[%s689 + $0x2c] sm:$0xf]
        %v702 = vld [vmem:[%s689 + $0x30] sm:$0xf]
        %v703 = vld [vmem:[%s689 + $0x34] sm:$0xf]
        %v704 = vld [vmem:[%s689 + $0x38] sm:$0xf]
        %v705 = vld [vmem:[%s689 + $0x3c] sm:$0xf]
        %v709 = vunpack.c.l.b16 %v670
        %v710 = vunpack.c.l.b16 %v671
        %v711 = vunpack.c.l.b16 %v688
        %v712 = vpack.c.b16 %v710, %v709
        %v713 = vpack.c.b16 %v711, %v711
        %vm714 = vsmask.f32 7424
        %v716 = vshrl.u32 %v712, 16
        %v718 = vshll.u32 %v712, 16
        %v720 = vrot.slane %v718, 1
        %v721 = vor.u32 %v716, %v720
        %v723 = vshll.u32 %v713, 16
        %v725 = vrot.slane %v723, 1
        %v726 = vsel %vm714, %v721, %v725
        %v744 = vunpack.c.l.b16 %v690
        %v745 = vunpack.c.l.b16 %v691
        %v746 = vunpack.c.l.b16 %v692
        %v747 = vunpack.c.l.b16 %v693
        %v748 = vunpack.c.l.b16 %v694
        %v749 = vunpack.c.l.b16 %v695
        %v750 = vunpack.c.l.b16 %v696
        %v751 = vunpack.c.l.b16 %v697
        %v752 = vunpack.c.l.b16 %v698
        %v753 = vunpack.c.l.b16 %v699
        %v754 = vunpack.c.l.b16 %v700
        %v755 = vunpack.c.l.b16 %v701
        %v756 = vunpack.c.l.b16 %v702
        %v757 = vunpack.c.l.b16 %v703
        %v758 = vunpack.c.l.b16 %v704
        %v759 = vunpack.c.l.b16 %v705
        %v760 = vpack.c.b16 %v745, %v744
        %v761 = vpack.c.b16 %v747, %v746
        %v762 = vpack.c.b16 %v749, %v748
        %v763 = vpack.c.b16 %v751, %v750
        %v764 = vpack.c.b16 %v753, %v752
        %v765 = vpack.c.b16 %v755, %v754
        %v766 = vpack.c.b16 %v757, %v756
        %v767 = vpack.c.b16 %v759, %v758
        %776 = vmatprep.subr.bf16.mxu0 0
        %777 = vmatpush1.bf16.msra.mxu0 %v767
        %778 = vmatprep.subr.bf16.mxu0 0
        %779 = vmatpush1.bf16.msra.mxu0 %v766
        %780 = vmatprep.subr.bf16.mxu0 0
        %781 = vmatpush1.bf16.msra.mxu0 %v765
        %782 = vmatprep.subr.bf16.mxu0 0
        %783 = vmatpush1.bf16.msra.mxu0 %v764
        %784 = vmatprep.subr.bf16.mxu0 0
        %785 = vmatpush1.bf16.msra.mxu0 %v763
        %786 = vmatprep.subr.bf16.mxu0 0
        %787 = vmatpush1.bf16.msra.mxu0 %v762
        %788 = vmatprep.subr.bf16.mxu0 0
        %789 = vmatpush1.bf16.msra.mxu0 %v761
        %790 = vmatprep.subr.bf16.mxu0 0
        %791 = vmatpush1.bf16.msra.mxu0 %v760
        %792 = vmatprep.subr.bf16.mxu0 0
        %793 = vmatpush2.bf16.msra.mxu0 0
        %794 = vmatprep.subr.bf16.mxu0 0
        %795 = vmatpush2.bf16.msra.mxu0 0
        %796 = vmatprep.subr.bf16.mxu0 0
        %797 = vmatpush2.bf16.msra.mxu0 0
        %798 = vmatprep.subr.bf16.mxu0 0
        %799 = vmatpush2.bf16.msra.mxu0 0
        %800 = vmatprep.subr.bf16.mxu0 0
        %801 = vmatpush2.bf16.msra.mxu0 0
        %802 = vmatprep.subr.bf16.mxu0 0
        %803 = vmatpush2.bf16.msra.mxu0 0
        %804 = vmatprep.subr.bf16.mxu0 0
        %805 = vmatpush2.bf16.msra.mxu0 0
        %806 = vmatprep.subr.bf16.mxu0 0
        %807 = vmatpush2.bf16.msra.mxu0 0
        %808 = vmatprep.mubr.bf16.mxu0 0
        %809 = vmatmul.mubr.bf16.gmra.mxu0 %v726
        %v810 = vpop.f32.mrf.mxu0
        %v811 = vadd.f32 0.0, %v810
        %v812 = vpop.f32.mrf.mxu0
        %v813 = vpop.f32.mrf.mxu0
        %v814 = vadd.f32 0.0, %v813
        %v815 = vpop.f32.mrf.mxu0
        %816 = vdwg.mxu0
        %v834 = vunpack.c.l.b16 %v672
        %v835 = vunpack.c.l.b16 %v673
        %v836 = vunpack.c.l.b16 %v674
        %v837 = vunpack.c.l.b16 %v675
        %v838 = vunpack.c.l.b16 %v676
        %v839 = vunpack.c.l.b16 %v677
        %v840 = vunpack.c.l.b16 %v678
        %v841 = vunpack.c.l.b16 %v679
        %v842 = vunpack.c.l.b16 %v680
        %v843 = vunpack.c.l.b16 %v681
        %v844 = vunpack.c.l.b16 %v682
        %v845 = vunpack.c.l.b16 %v683
        %v846 = vunpack.c.l.b16 %v684
        %v847 = vunpack.c.l.b16 %v685
        %v848 = vunpack.c.l.b16 %v686
        %v849 = vunpack.c.l.b16 %v687
        %v850 = vpack.c.b16 %v835, %v834
        %v851 = vpack.c.b16 %v837, %v836
        %v852 = vpack.c.b16 %v839, %v838
        %v853 = vpack.c.b16 %v841, %v840
        %v854 = vpack.c.b16 %v843, %v842
        %v855 = vpack.c.b16 %v845, %v844
        %v856 = vpack.c.b16 %v847, %v846
        %v857 = vpack.c.b16 %v849, %v848
        %866 = vmatprep.subr.bf16.mxu0 0
        %867 = vmatpush1.bf16.msra.mxu0 %v857
        %868 = vmatprep.subr.bf16.mxu0 0
        %869 = vmatpush1.bf16.msra.mxu0 %v856
        %870 = vmatprep.subr.bf16.mxu0 0
        %871 = vmatpush1.bf16.msra.mxu0 %v855
        %872 = vmatprep.subr.bf16.mxu0 0
        %873 = vmatpush1.bf16.msra.mxu0 %v854
        %874 = vmatprep.subr.bf16.mxu0 0
        %875 = vmatpush1.bf16.msra.mxu0 %v853
        %876 = vmatprep.subr.bf16.mxu0 0
        %877 = vmatpush1.bf16.msra.mxu0 %v852
        %878 = vmatprep.subr.bf16.mxu0 0
        %879 = vmatpush1.bf16.msra.mxu0 %v851
        %880 = vmatprep.subr.bf16.mxu0 0
        %881 = vmatpush1.bf16.msra.mxu0 %v850
        %882 = vmatprep.subr.bf16.mxu0 0
        %883 = vmatpush2.bf16.msra.mxu0 0
        %884 = vmatprep.subr.bf16.mxu0 0
        %885 = vmatpush2.bf16.msra.mxu0 0
        %886 = vmatprep.subr.bf16.mxu0 0
        %887 = vmatpush2.bf16.msra.mxu0 0
        %888 = vmatprep.subr.bf16.mxu0 0
        %889 = vmatpush2.bf16.msra.mxu0 0
        %890 = vmatprep.subr.bf16.mxu0 0
        %891 = vmatpush2.bf16.msra.mxu0 0
        %892 = vmatprep.subr.bf16.mxu0 0
        %893 = vmatpush2.bf16.msra.mxu0 0
        %894 = vmatprep.subr.bf16.mxu0 0
        %895 = vmatpush2.bf16.msra.mxu0 0
        %896 = vmatprep.subr.bf16.mxu0 0
        %897 = vmatpush2.bf16.msra.mxu0 0
        %898 = vmatprep.mubr.bf16.mxu0 0
        %899 = vmatmul.mubr.bf16.gmra.mxu0 %v712
        %v900 = vpop.f32.mrf.mxu0
        %v901 = vadd.f32 %v811, %v900
        %v902 = vpop.f32.mrf.mxu0
        %v903 = vpop.f32.mrf.mxu0
        %v904 = vadd.f32 %v814, %v903
        %v905 = vpop.f32.mrf.mxu0
        %906 = vdwg.mxu0
        %v907 = vld [vmem:[#allocation2] sm:$0xe]
        %s908 = scalar_lea.vmem [#allocation9], 128
        %v909 = vld [vmem:[%s908] sm:$0xf]
        %v910 = vld [vmem:[%s908 + $0x4] sm:$0xf]
        %v911 = vld [vmem:[%s908 + $0x8] sm:$0xf]
        %v912 = vld [vmem:[%s908 + $0xc] sm:$0xf]
        %v913 = vld [vmem:[%s908 + $0x10] sm:$0xf]
        %v914 = vld [vmem:[%s908 + $0x14] sm:$0xf]
        %v915 = vld [vmem:[%s908 + $0x18] sm:$0xf]
        %v916 = vld [vmem:[%s908 + $0x1c] sm:$0xf]
        %v917 = vld [vmem:[%s908 + $0x20] sm:$0xf]
        %v918 = vld [vmem:[%s908 + $0x24] sm:$0xf]
        %v919 = vld [vmem:[%s908 + $0x28] sm:$0xf]
        %v920 = vld [vmem:[%s908 + $0x2c] sm:$0xf]
        %v921 = vld [vmem:[%s908 + $0x30] sm:$0xf]
        %v922 = vld [vmem:[%s908 + $0x34] sm:$0xf]
        %v923 = vld [vmem:[%s908 + $0x38] sm:$0xf]
        %v924 = vld [vmem:[%s908 + $0x3c] sm:$0xf]
        %v926 = vunpack.c.l.b16 %v907
        %v927 = vpack.c.b16 %v710, %v926
        %vm928 = vcmask 1046528
        %v929 = vrot.slane %v927, 1
        %v930 = vrot.slane %v713, 1
        %v931 = vsel %vm928, %v929, %v930
        %v949 = vunpack.c.l.b16 %v909
        %v950 = vunpack.c.l.b16 %v910
        %v951 = vunpack.c.l.b16 %v911
        %v952 = vunpack.c.l.b16 %v912
        %v953 = vunpack.c.l.b16 %v913
        %v954 = vunpack.c.l.b16 %v914
        %v955 = vunpack.c.l.b16 %v915
        %v956 = vunpack.c.l.b16 %v916
        %v957 = vunpack.c.l.b16 %v917
        %v958 = vunpack.c.l.b16 %v918
        %v959 = vunpack.c.l.b16 %v919
        %v960 = vunpack.c.l.b16 %v920
        %v961 = vunpack.c.l.b16 %v921
        %v962 = vunpack.c.l.b16 %v922
        %v963 = vunpack.c.l.b16 %v923
        %v964 = vunpack.c.l.b16 %v924
        %v965 = vpack.c.b16 %v950, %v949
        %v966 = vpack.c.b16 %v952, %v951
        %v967 = vpack.c.b16 %v954, %v953
        %v968 = vpack.c.b16 %v956, %v955
        %v969 = vpack.c.b16 %v958, %v957
        %v970 = vpack.c.b16 %v960, %v959
        %v971 = vpack.c.b16 %v962, %v961
        %v972 = vpack.c.b16 %v964, %v963
        %981 = vmatprep.subr.bf16.mxu0 0
        %982 = vmatpush1.bf16.msra.mxu0 %v972
        %983 = vmatprep.subr.bf16.mxu0 0
        %984 = vmatpush1.bf16.msra.mxu0 %v971
        %985 = vmatprep.subr.bf16.mxu0 0
        %986 = vmatpush1.bf16.msra.mxu0 %v970
        %987 = vmatprep.subr.bf16.mxu0 0
        %988 = vmatpush1.bf16.msra.mxu0 %v969
        %989 = vmatprep.subr.bf16.mxu0 0
        %990 = vmatpush1.bf16.msra.mxu0 %v968
        %991 = vmatprep.subr.bf16.mxu0 0
        %992 = vmatpush1.bf16.msra.mxu0 %v967
        %993 = vmatprep.subr.bf16.mxu0 0
        %994 = vmatpush1.bf16.msra.mxu0 %v966
        %995 = vmatprep.subr.bf16.mxu0 0
        %996 = vmatpush1.bf16.msra.mxu0 %v965
        %997 = vmatprep.subr.bf16.mxu0 0
        %998 = vmatpush2.bf16.msra.mxu0 0
        %999 = vmatprep.subr.bf16.mxu0 0
        %1000 = vmatpush2.bf16.msra.mxu0 0
        %1001 = vmatprep.subr.bf16.mxu0 0
        %1002 = vmatpush2.bf16.msra.mxu0 0
        %1003 = vmatprep.subr.bf16.mxu0 0
        %1004 = vmatpush2.bf16.msra.mxu0 0
        %1005 = vmatprep.subr.bf16.mxu0 0
        %1006 = vmatpush2.bf16.msra.mxu0 0
        %1007 = vmatprep.subr.bf16.mxu0 0
        %1008 = vmatpush2.bf16.msra.mxu0 0
        %1009 = vmatprep.subr.bf16.mxu0 0
        %1010 = vmatpush2.bf16.msra.mxu0 0
        %1011 = vmatprep.subr.bf16.mxu0 0
        %1012 = vmatpush2.bf16.msra.mxu0 0
        %1013 = vmatprep.mubr.bf16.mxu0 0
        %1014 = vmatmul.mubr.bf16.gmra.mxu0 %v931
        %v1015 = vpop.f32.mrf.mxu0
        %v1016 = vadd.f32 0.0, %v1015
        %v1017 = vpop.f32.mrf.mxu0
        %v1018 = vpop.f32.mrf.mxu0
        %v1019 = vadd.f32 0.0, %v1018
        %v1020 = vpop.f32.mrf.mxu0
        %1021 = vdwg.mxu0
        %v1022 = vadd.f32 %v901, %v1016
        %v1023 = vadd.f32 %v904, %v1019
        %v1024 = vld [vmem:[#allocation2 + $0x8] sm:$0x3]
        %s1025 = scalar_lea.vmem [#allocation9], 192
        %v1026 = vld [vmem:[%s1025] sm:$0xf]
        %v1027 = vld [vmem:[%s1025 + $0x4] sm:$0xf]
        %v1028 = vld [vmem:[%s1025 + $0x8] sm:$0xf]
        %v1029 = vld [vmem:[%s1025 + $0xc] sm:$0xf]
        %v1030 = vld [vmem:[%s1025 + $0x10] sm:$0xf]
        %v1031 = vld [vmem:[%s1025 + $0x14] sm:$0xf]
        %v1032 = vld [vmem:[%s1025 + $0x18] sm:$0xf]
        %v1033 = vld [vmem:[%s1025 + $0x1c] sm:$0xf]
        %v1034 = vld [vmem:[%s1025 + $0x20] sm:$0xf]
        %v1035 = vld [vmem:[%s1025 + $0x24] sm:$0xf]
        %v1036 = vld [vmem:[%s1025 + $0x28] sm:$0xf]
        %v1037 = vld [vmem:[%s1025 + $0x2c] sm:$0xf]
        %v1038 = vld [vmem:[%s1025 + $0x30] sm:$0xf]
        %v1039 = vld [vmem:[%s1025 + $0x34] sm:$0xf]
        %v1040 = vld [vmem:[%s1025 + $0x38] sm:$0xf]
        %v1041 = vld [vmem:[%s1025 + $0x3c] sm:$0xf]
        %v1043 = vunpack.c.l.b16 %v1024
        %v1044 = vpack.c.b16 %v1043, %v1043
        %vm1045 = vsmask.f32 6400
        %v1047 = vshrl.u32 %v927, 16
        %v1049 = vrot.slane %v1047, 1
        %v1050 = vshll.u32 %v927, 16
        %v1052 = vrot.slane %v1050, 2
        %v1053 = vor.u32 %v1049, %v1052
        %v1055 = vshrl.u32 %v1044, 16
        %v1057 = vrot.slane %v1055, 1
        %v1058 = vshll.u32 %v1044, 16
        %v1060 = vrot.slane %v1058, 2
        %v1061 = vor.u32 %v1057, %v1060
        %v1062 = vsel %vm1045, %v1053, %v1061
        %v1080 = vunpack.c.l.b16 %v1026
        %v1081 = vunpack.c.l.b16 %v1027
        %v1082 = vunpack.c.l.b16 %v1028
        %v1083 = vunpack.c.l.b16 %v1029
        %v1084 = vunpack.c.l.b16 %v1030
        %v1085 = vunpack.c.l.b16 %v1031
        %v1086 = vunpack.c.l.b16 %v1032
        %v1087 = vunpack.c.l.b16 %v1033
        %v1088 = vunpack.c.l.b16 %v1034
        %v1089 = vunpack.c.l.b16 %v1035
        %v1090 = vunpack.c.l.b16 %v1036
        %v1091 = vunpack.c.l.b16 %v1037
        %v1092 = vunpack.c.l.b16 %v1038
        %v1093 = vunpack.c.l.b16 %v1039
        %v1094 = vunpack.c.l.b16 %v1040
        %v1095 = vunpack.c.l.b16 %v1041
        %v1096 = vpack.c.b16 %v1081, %v1080
        %v1097 = vpack.c.b16 %v1083, %v1082
        %v1098 = vpack.c.b16 %v1085, %v1084
        %v1099 = vpack.c.b16 %v1087, %v1086
        %v1100 = vpack.c.b16 %v1089, %v1088
        %v1101 = vpack.c.b16 %v1091, %v1090
        %v1102 = vpack.c.b16 %v1093, %v1092
        %v1103 = vpack.c.b16 %v1095, %v1094
        %1112 = vmatprep.subr.bf16.mxu0 0
        %1113 = vmatpush1.bf16.msra.mxu0 %v1103
        %1114 = vmatprep.subr.bf16.mxu0 0
        %1115 = vmatpush1.bf16.msra.mxu0 %v1102
        %1116 = vmatprep.subr.bf16.mxu0 0
        %1117 = vmatpush1.bf16.msra.mxu0 %v1101
        %1118 = vmatprep.subr.bf16.mxu0 0
        %1119 = vmatpush1.bf16.msra.mxu0 %v1100
        %1120 = vmatprep.subr.bf16.mxu0 0
        %1121 = vmatpush1.bf16.msra.mxu0 %v1099
        %1122 = vmatprep.subr.bf16.mxu0 0
        %1123 = vmatpush1.bf16.msra.mxu0 %v1098
        %1124 = vmatprep.subr.bf16.mxu0 0
        %1125 = vmatpush1.bf16.msra.mxu0 %v1097
        %1126 = vmatprep.subr.bf16.mxu0 0
        %1127 = vmatpush1.bf16.msra.mxu0 %v1096
        %1128 = vmatprep.subr.bf16.mxu0 0
        %1129 = vmatpush2.bf16.msra.mxu0 0
        %1130 = vmatprep.subr.bf16.mxu0 0
        %1131 = vmatpush2.bf16.msra.mxu0 0
        %1132 = vmatprep.subr.bf16.mxu0 0
        %1133 = vmatpush2.bf16.msra.mxu0 0
        %1134 = vmatprep.subr.bf16.mxu0 0
        %1135 = vmatpush2.bf16.msra.mxu0 0
        %1136 = vmatprep.subr.bf16.mxu0 0
        %1137 = vmatpush2.bf16.msra.mxu0 0
        %1138 = vmatprep.subr.bf16.mxu0 0
        %1139 = vmatpush2.bf16.msra.mxu0 0
        %1140 = vmatprep.subr.bf16.mxu0 0
        %1141 = vmatpush2.bf16.msra.mxu0 0
        %1142 = vmatprep.subr.bf16.mxu0 0
        %1143 = vmatpush2.bf16.msra.mxu0 0
        %1144 = vmatprep.mubr.bf16.mxu0 0
        %1145 = vmatmul.mubr.bf16.gmra.mxu0 %v1062
        %v1146 = vpop.f32.mrf.mxu0
        %v1147 = vadd.f32 0.0, %v1146
        %v1148 = vpop.f32.mrf.mxu0
        %v1149 = vpop.f32.mrf.mxu0
        %v1150 = vadd.f32 0.0, %v1149
        %v1151 = vpop.f32.mrf.mxu0
        %1152 = vdwg.mxu0
        %v1153 = vadd.f32 %v1022, %v1147
        %v1154 = vadd.f32 %v1023, %v1150
        %v1155 = vld [vmem:[#allocation2] sm:$0xc]
        %s1156 = scalar_lea.vmem [#allocation9], 256
        %v1157 = vld [vmem:[%s1156] sm:$0xf]
        %v1158 = vld [vmem:[%s1156 + $0x4] sm:$0xf]
        %v1159 = vld [vmem:[%s1156 + $0x8] sm:$0xf]
        %v1160 = vld [vmem:[%s1156 + $0xc] sm:$0xf]
        %v1161 = vld [vmem:[%s1156 + $0x10] sm:$0xf]
        %v1162 = vld [vmem:[%s1156 + $0x14] sm:$0xf]
        %v1163 = vld [vmem:[%s1156 + $0x18] sm:$0xf]
        %v1164 = vld [vmem:[%s1156 + $0x1c] sm:$0xf]
        %v1165 = vld [vmem:[%s1156 + $0x20] sm:$0xf]
        %v1166 = vld [vmem:[%s1156 + $0x24] sm:$0xf]
        %v1167 = vld [vmem:[%s1156 + $0x28] sm:$0xf]
        %v1168 = vld [vmem:[%s1156 + $0x2c] sm:$0xf]
        %v1169 = vld [vmem:[%s1156 + $0x30] sm:$0xf]
        %v1170 = vld [vmem:[%s1156 + $0x34] sm:$0xf]
        %v1171 = vld [vmem:[%s1156 + $0x38] sm:$0xf]
        %v1172 = vld [vmem:[%s1156 + $0x3c] sm:$0xf]
        %v1174 = vunpack.c.l.b16 %v1155
        %v1175 = vpack.c.b16 %v710, %v1174
        %vm1176 = vcmask 1045504
        %v1177 = vrot.slane %v1175, 2
        %v1178 = vrot.slane %v1044, 2
        %v1179 = vsel %vm1176, %v1177, %v1178
        %v1197 = vunpack.c.l.b16 %v1157
        %v1198 = vunpack.c.l.b16 %v1158
        %v1199 = vunpack.c.l.b16 %v1159
        %v1200 = vunpack.c.l.b16 %v1160
        %v1201 = vunpack.c.l.b16 %v1161
        %v1202 = vunpack.c.l.b16 %v1162
        %v1203 = vunpack.c.l.b16 %v1163
        %v1204 = vunpack.c.l.b16 %v1164
        %v1205 = vunpack.c.l.b16 %v1165
        %v1206 = vunpack.c.l.b16 %v1166
        %v1207 = vunpack.c.l.b16 %v1167
        %v1208 = vunpack.c.l.b16 %v1168
        %v1209 = vunpack.c.l.b16 %v1169
        %v1210 = vunpack.c.l.b16 %v1170
        %v1211 = vunpack.c.l.b16 %v1171
        %v1212 = vunpack.c.l.b16 %v1172
        %v1213 = vpack.c.b16 %v1198, %v1197
        %v1214 = vpack.c.b16 %v1200, %v1199
        %v1215 = vpack.c.b16 %v1202, %v1201
        %v1216 = vpack.c.b16 %v1204, %v1203
        %v1217 = vpack.c.b16 %v1206, %v1205
        %v1218 = vpack.c.b16 %v1208, %v1207
        %v1219 = vpack.c.b16 %v1210, %v1209
        %v1220 = vpack.c.b16 %v1212, %v1211
        %1229 = vmatprep.subr.bf16.mxu0 0
        %1230 = vmatpush1.bf16.msra.mxu0 %v1220
        %1231 = vmatprep.subr.bf16.mxu0 0
        %1232 = vmatpush1.bf16.msra.mxu0 %v1219
        %1233 = vmatprep.subr.bf16.mxu0 0
        %1234 = vmatpush1.bf16.msra.mxu0 %v1218
        %1235 = vmatprep.subr.bf16.mxu0 0
        %1236 = vmatpush1.bf16.msra.mxu0 %v1217
        %1237 = vmatprep.subr.bf16.mxu0 0
        %1238 = vmatpush1.bf16.msra.mxu0 %v1216
        %1239 = vmatprep.subr.bf16.mxu0 0
        %1240 = vmatpush1.bf16.msra.mxu0 %v1215
        %1241 = vmatprep.subr.bf16.mxu0 0
        %1242 = vmatpush1.bf16.msra.mxu0 %v1214
        %1243 = vmatprep.subr.bf16.mxu0 0
        %1244 = vmatpush1.bf16.msra.mxu0 %v1213
        %1245 = vmatprep.subr.bf16.mxu0 0
        %1246 = vmatpush2.bf16.msra.mxu0 0
        %1247 = vmatprep.subr.bf16.mxu0 0
        %1248 = vmatpush2.bf16.msra.mxu0 0
        %1249 = vmatprep.subr.bf16.mxu0 0
        %1250 = vmatpush2.bf16.msra.mxu0 0
        %1251 = vmatprep.subr.bf16.mxu0 0
        %1252 = vmatpush2.bf16.msra.mxu0 0
        %1253 = vmatprep.subr.bf16.mxu0 0
        %1254 = vmatpush2.bf16.msra.mxu0 0
        %1255 = vmatprep.subr.bf16.mxu0 0
        %1256 = vmatpush2.bf16.msra.mxu0 0
        %1257 = vmatprep.subr.bf16.mxu0 0
        %1258 = vmatpush2.bf16.msra.mxu0 0
        %1259 = vmatprep.subr.bf16.mxu0 0
        %1260 = vmatpush2.bf16.msra.mxu0 0
        %1261 = vmatprep.mubr.bf16.mxu0 0
        %1262 = vmatmul.mubr.bf16.gmra.mxu0 %v1179
        %v1263 = vpop.f32.mrf.mxu0
        %v1264 = vadd.f32 0.0, %v1263
        %v1265 = vpop.f32.mrf.mxu0
        %v1266 = vpop.f32.mrf.mxu0
        %v1267 = vadd.f32 0.0, %v1266
        %v1268 = vpop.f32.mrf.mxu0
        %1269 = vdwg.mxu0
        %v1270 = vadd.f32 %v1153, %v1264
        %v1271 = vadd.f32 %v1154, %v1267
        %v1272 = vld [vmem:[#allocation2 + $0x8] sm:$0x7]
        %s1273 = scalar_lea.vmem [#allocation9], 320
        %v1274 = vld [vmem:[%s1273] sm:$0xf]
        %v1275 = vld [vmem:[%s1273 + $0x4] sm:$0xf]
        %v1276 = vld [vmem:[%s1273 + $0x8] sm:$0xf]
        %v1277 = vld [vmem:[%s1273 + $0xc] sm:$0xf]
        %v1278 = vld [vmem:[%s1273 + $0x10] sm:$0xf]
        %v1279 = vld [vmem:[%s1273 + $0x14] sm:$0xf]
        %v1280 = vld [vmem:[%s1273 + $0x18] sm:$0xf]
        %v1281 = vld [vmem:[%s1273 + $0x1c] sm:$0xf]
        %v1282 = vld [vmem:[%s1273 + $0x20] sm:$0xf]
        %v1283 = vld [vmem:[%s1273 + $0x24] sm:$0xf]
        %v1284 = vld [vmem:[%s1273 + $0x28] sm:$0xf]
        %v1285 = vld [vmem:[%s1273 + $0x2c] sm:$0xf]
        %v1286 = vld [vmem:[%s1273 + $0x30] sm:$0xf]
        %v1287 = vld [vmem:[%s1273 + $0x34] sm:$0xf]
        %v1288 = vld [vmem:[%s1273 + $0x38] sm:$0xf]
        %v1289 = vld [vmem:[%s1273 + $0x3c] sm:$0xf]
        %v1291 = vunpack.c.l.b16 %v1272
        %v1292 = vpack.c.b16 %v1291, %v1291
        %vm1293 = vsmask.f32 5376
        %v1295 = vshrl.u32 %v1175, 16
        %v1297 = vrot.slane %v1295, 2
        %v1298 = vshll.u32 %v1175, 16
        %v1300 = vrot.slane %v1298, 3
        %v1301 = vor.u32 %v1297, %v1300
        %v1303 = vshrl.u32 %v1292, 16
        %v1305 = vrot.slane %v1303, 2
        %v1306 = vshll.u32 %v1292, 16
        %v1308 = vrot.slane %v1306, 3
        %v1309 = vor.u32 %v1305, %v1308
        %v1310 = vsel %vm1293, %v1301, %v1309
        %v1328 = vunpack.c.l.b16 %v1274
        %v1329 = vunpack.c.l.b16 %v1275
        %v1330 = vunpack.c.l.b16 %v1276
        %v1331 = vunpack.c.l.b16 %v1277
        %v1332 = vunpack.c.l.b16 %v1278
        %v1333 = vunpack.c.l.b16 %v1279
        %v1334 = vunpack.c.l.b16 %v1280
        %v1335 = vunpack.c.l.b16 %v1281
        %v1336 = vunpack.c.l.b16 %v1282
        %v1337 = vunpack.c.l.b16 %v1283
        %v1338 = vunpack.c.l.b16 %v1284
        %v1339 = vunpack.c.l.b16 %v1285
        %v1340 = vunpack.c.l.b16 %v1286
        %v1341 = vunpack.c.l.b16 %v1287
        %v1342 = vunpack.c.l.b16 %v1288
        %v1343 = vunpack.c.l.b16 %v1289
        %v1344 = vpack.c.b16 %v1329, %v1328
        %v1345 = vpack.c.b16 %v1331, %v1330
        %v1346 = vpack.c.b16 %v1333, %v1332
        %v1347 = vpack.c.b16 %v1335, %v1334
        %v1348 = vpack.c.b16 %v1337, %v1336
        %v1349 = vpack.c.b16 %v1339, %v1338
        %v1350 = vpack.c.b16 %v1341, %v1340
        %v1351 = vpack.c.b16 %v1343, %v1342
        %1360 = vmatprep.subr.bf16.mxu0 0
        %1361 = vmatpush1.bf16.msra.mxu0 %v1351
        %1362 = vmatprep.subr.bf16.mxu0 0
        %1363 = vmatpush1.bf16.msra.mxu0 %v1350
        %1364 = vmatprep.subr.bf16.mxu0 0
        %1365 = vmatpush1.bf16.msra.mxu0 %v1349
        %1366 = vmatprep.subr.bf16.mxu0 0
        %1367 = vmatpush1.bf16.msra.mxu0 %v1348
        %1368 = vmatprep.subr.bf16.mxu0 0
        %1369 = vmatpush1.bf16.msra.mxu0 %v1347
        %1370 = vmatprep.subr.bf16.mxu0 0
        %1371 = vmatpush1.bf16.msra.mxu0 %v1346
        %1372 = vmatprep.subr.bf16.mxu0 0
        %1373 = vmatpush1.bf16.msra.mxu0 %v1345
        %1374 = vmatprep.subr.bf16.mxu0 0
        %1375 = vmatpush1.bf16.msra.mxu0 %v1344
        %1376 = vmatprep.subr.bf16.mxu0 0
        %1377 = vmatpush2.bf16.msra.mxu0 0
        %1378 = vmatprep.subr.bf16.mxu0 0
        %1379 = vmatpush2.bf16.msra.mxu0 0
        %1380 = vmatprep.subr.bf16.mxu0 0
        %1381 = vmatpush2.bf16.msra.mxu0 0
        %1382 = vmatprep.subr.bf16.mxu0 0
        %1383 = vmatpush2.bf16.msra.mxu0 0
        %1384 = vmatprep.subr.bf16.mxu0 0
        %1385 = vmatpush2.bf16.msra.mxu0 0
        %1386 = vmatprep.subr.bf16.mxu0 0
        %1387 = vmatpush2.bf16.msra.mxu0 0
        %1388 = vmatprep.subr.bf16.mxu0 0
        %1389 = vmatpush2.bf16.msra.mxu0 0
        %1390 = vmatprep.subr.bf16.mxu0 0
        %1391 = vmatpush2.bf16.msra.mxu0 0
        %1392 = vmatprep.mubr.bf16.mxu0 0
        %1393 = vmatmul.mubr.bf16.gmra.mxu0 %v1310
        %v1394 = vpop.f32.mrf.mxu0
        %v1395 = vadd.f32 0.0, %v1394
        %v1396 = vpop.f32.mrf.mxu0
        %v1397 = vpop.f32.mrf.mxu0
        %v1398 = vadd.f32 0.0, %v1397
        %v1399 = vpop.f32.mrf.mxu0
        %1400 = vdwg.mxu0
        %v1401 = vadd.f32 %v1270, %v1395
        %v1402 = vadd.f32 %v1271, %v1398
        %v1403 = vld [vmem:[#allocation2] sm:$0x8]
        %s1404 = scalar_lea.vmem [#allocation9], 384
        %v1405 = vld [vmem:[%s1404] sm:$0xf]
        %v1406 = vld [vmem:[%s1404 + $0x4] sm:$0xf]
        %v1407 = vld [vmem:[%s1404 + $0x8] sm:$0xf]
        %v1408 = vld [vmem:[%s1404 + $0xc] sm:$0xf]
        %v1409 = vld [vmem:[%s1404 + $0x10] sm:$0xf]
        %v1410 = vld [vmem:[%s1404 + $0x14] sm:$0xf]
        %v1411 = vld [vmem:[%s1404 + $0x18] sm:$0xf]
        %v1412 = vld [vmem:[%s1404 + $0x1c] sm:$0xf]
        %v1413 = vld [vmem:[%s1404 + $0x20] sm:$0xf]
        %v1414 = vld [vmem:[%s1404 + $0x24] sm:$0xf]
        %v1415 = vld [vmem:[%s1404 + $0x28] sm:$0xf]
        %v1416 = vld [vmem:[%s1404 + $0x2c] sm:$0xf]
        %v1417 = vld [vmem:[%s1404 + $0x30] sm:$0xf]
        %v1418 = vld [vmem:[%s1404 + $0x34] sm:$0xf]
        %v1419 = vld [vmem:[%s1404 + $0x38] sm:$0xf]
        %v1420 = vld [vmem:[%s1404 + $0x3c] sm:$0xf]
        %v1422 = vunpack.c.l.b16 %v1403
        %v1423 = vpack.c.b16 %v710, %v1422
        %vm1424 = vcmask 1044480
        %v1425 = vrot.slane %v1423, 3
        %v1426 = vrot.slane %v1292, 3
        %v1427 = vsel %vm1424, %v1425, %v1426
        %v1445 = vunpack.c.l.b16 %v1405
        %v1446 = vunpack.c.l.b16 %v1406
        %v1447 = vunpack.c.l.b16 %v1407
        %v1448 = vunpack.c.l.b16 %v1408
        %v1449 = vunpack.c.l.b16 %v1409
        %v1450 = vunpack.c.l.b16 %v1410
        %v1451 = vunpack.c.l.b16 %v1411
        %v1452 = vunpack.c.l.b16 %v1412
        %v1453 = vunpack.c.l.b16 %v1413
        %v1454 = vunpack.c.l.b16 %v1414
        %v1455 = vunpack.c.l.b16 %v1415
        %v1456 = vunpack.c.l.b16 %v1416
        %v1457 = vunpack.c.l.b16 %v1417
        %v1458 = vunpack.c.l.b16 %v1418
        %v1459 = vunpack.c.l.b16 %v1419
        %v1460 = vunpack.c.l.b16 %v1420
        %v1461 = vpack.c.b16 %v1446, %v1445
        %v1462 = vpack.c.b16 %v1448, %v1447
        %v1463 = vpack.c.b16 %v1450, %v1449
        %v1464 = vpack.c.b16 %v1452, %v1451
        %v1465 = vpack.c.b16 %v1454, %v1453
        %v1466 = vpack.c.b16 %v1456, %v1455
        %v1467 = vpack.c.b16 %v1458, %v1457
        %v1468 = vpack.c.b16 %v1460, %v1459
        %1477 = vmatprep.subr.bf16.mxu0 0
        %1478 = vmatpush1.bf16.msra.mxu0 %v1468
        %1479 = vmatprep.subr.bf16.mxu0 0
        %1480 = vmatpush1.bf16.msra.mxu0 %v1467
        %1481 = vmatprep.subr.bf16.mxu0 0
        %1482 = vmatpush1.bf16.msra.mxu0 %v1466
        %1483 = vmatprep.subr.bf16.mxu0 0
        %1484 = vmatpush1.bf16.msra.mxu0 %v1465
        %1485 = vmatprep.subr.bf16.mxu0 0
        %1486 = vmatpush1.bf16.msra.mxu0 %v1464
        %1487 = vmatprep.subr.bf16.mxu0 0
        %1488 = vmatpush1.bf16.msra.mxu0 %v1463
        %1489 = vmatprep.subr.bf16.mxu0 0
        %1490 = vmatpush1.bf16.msra.mxu0 %v1462
        %1491 = vmatprep.subr.bf16.mxu0 0
        %1492 = vmatpush1.bf16.msra.mxu0 %v1461
        %1493 = vmatprep.subr.bf16.mxu0 0
        %1494 = vmatpush2.bf16.msra.mxu0 0
        %1495 = vmatprep.subr.bf16.mxu0 0
        %1496 = vmatpush2.bf16.msra.mxu0 0
        %1497 = vmatprep.subr.bf16.mxu0 0
        %1498 = vmatpush2.bf16.msra.mxu0 0
        %1499 = vmatprep.subr.bf16.mxu0 0
        %1500 = vmatpush2.bf16.msra.mxu0 0
        %1501 = vmatprep.subr.bf16.mxu0 0
        %1502 = vmatpush2.bf16.msra.mxu0 0
        %1503 = vmatprep.subr.bf16.mxu0 0
        %1504 = vmatpush2.bf16.msra.mxu0 0
        %1505 = vmatprep.subr.bf16.mxu0 0
        %1506 = vmatpush2.bf16.msra.mxu0 0
        %1507 = vmatprep.subr.bf16.mxu0 0
        %1508 = vmatpush2.bf16.msra.mxu0 0
        %1509 = vmatprep.mubr.bf16.mxu0 0
        %1510 = vmatmul.mubr.bf16.gmra.mxu0 %v1427
        %v1511 = vpop.f32.mrf.mxu0
        %v1512 = vadd.f32 0.0, %v1511
        %v1513 = vpop.f32.mrf.mxu0
        %v1514 = vpop.f32.mrf.mxu0
        %v1515 = vadd.f32 0.0, %v1514
        %v1516 = vpop.f32.mrf.mxu0
        %1517 = vdwg.mxu0
        %v1518 = vadd.f32 %v1401, %v1512
        %v1519 = vadd.f32 %v1402, %v1515
        %v1520 = vld [vmem:[%s5] sm:$0x1]
        %v1522 = vlaneseq
        %v1523 = vshrl.u32 %v1522, 7
        %v1524 = vsub.s32 0, %v1523
        %v1525 = vrot.slane %v1520, %v1524
        %v1527 = vadd.f32 %v1518, %v1525
        %v1528 = vadd.f32 %v1519, %v1525
        %v1529 = vmul.f32 %v1527, %v1527
        %v1530 = vmul.f32 %v1528, %v1528
        %1531 = vadd.xlane.f32.xlu0 %v1529
        %v1532 = vpop.xlane.xlu0 %1531
        %1533 = vadd.xlane.f32.xlu0 %v1530
        %v1534 = vpop.xlane.xlu0 %1533
        %v1535 = vmax.f32 %v1532, 1e-24
        %v1536 = vmax.f32 %v1534, 1e-24
        %v1537 = vrsqrt.pop %v1535
        %v1538 = vrsqrt.pop %v1536
        %v1539 = vmul.f32 %v1527, %v1537
        %v1540 = vmul.f32 %v1528, %v1538
        %v1541 = vld [vmem:[%s6] sm:$0x1]
        %v1543 = vlaneseq
        %v1544 = vshrl.u32 %v1543, 7
        %v1545 = vsub.s32 0, %v1544
        %v1546 = vrot.slane %v1541, %v1545
        %v1548 = vmul.f32 %v1539, %v1546
        %v1549 = vmul.f32 %v1540, %v1546
        %v1550 = vpack.c.bf16 %v1549, %v1548
        %v1551 = vld [vmem:[#allocation11] sm:$0xf]
        %v1552 = vld [vmem:[#allocation11 + $0x4] sm:$0xf]
        %v1553 = vld [vmem:[#allocation11 + $0x8] sm:$0xf]
        %v1554 = vld [vmem:[#allocation11 + $0xc] sm:$0xf]
        %v1555 = vld [vmem:[#allocation11 + $0x10] sm:$0xf]
        %v1556 = vld [vmem:[#allocation11 + $0x14] sm:$0xf]
        %v1557 = vld [vmem:[#allocation11 + $0x18] sm:$0xf]
        %v1558 = vld [vmem:[#allocation11 + $0x1c] sm:$0xf]
        %v1559 = vld [vmem:[#allocation11 + $0x20] sm:$0xf]
        %v1560 = vld [vmem:[#allocation11 + $0x24] sm:$0xf]
        %v1561 = vld [vmem:[#allocation11 + $0x28] sm:$0xf]
        %v1562 = vld [vmem:[#allocation11 + $0x2c] sm:$0xf]
        %v1563 = vld [vmem:[#allocation11 + $0x30] sm:$0xf]
        %v1564 = vld [vmem:[#allocation11 + $0x34] sm:$0xf]
        %v1565 = vld [vmem:[#allocation11 + $0x38] sm:$0xf]
        %v1566 = vld [vmem:[#allocation11 + $0x3c] sm:$0xf]
        %v1567 = vld [vmem:[%s8] sm:$0x1]
        %v1569 = vlaneseq
        %v1570 = vshrl.u32 %v1569, 7
        %v1571 = vsub.s32 0, %v1570
        %v1572 = vrot.slane %v1567, %v1571
        %v1590 = vunpack.c.l.b16 %v1551
        %v1591 = vunpack.c.l.b16 %v1552
        %v1592 = vunpack.c.l.b16 %v1553
        %v1593 = vunpack.c.l.b16 %v1554
        %v1594 = vunpack.c.l.b16 %v1555
        %v1595 = vunpack.c.l.b16 %v1556
        %v1596 = vunpack.c.l.b16 %v1557
        %v1597 = vunpack.c.l.b16 %v1558
        %v1598 = vunpack.c.l.b16 %v1559
        %v1599 = vunpack.c.l.b16 %v1560
        %v1600 = vunpack.c.l.b16 %v1561
        %v1601 = vunpack.c.l.b16 %v1562
        %v1602 = vunpack.c.l.b16 %v1563
        %v1603 = vunpack.c.l.b16 %v1564
        %v1604 = vunpack.c.l.b16 %v1565
        %v1605 = vunpack.c.l.b16 %v1566
        %v1606 = vpack.c.b16 %v1591, %v1590
        %v1607 = vpack.c.b16 %v1593, %v1592
        %v1608 = vpack.c.b16 %v1595, %v1594
        %v1609 = vpack.c.b16 %v1597, %v1596
        %v1610 = vpack.c.b16 %v1599, %v1598
        %v1611 = vpack.c.b16 %v1601, %v1600
        %v1612 = vpack.c.b16 %v1603, %v1602
        %v1613 = vpack.c.b16 %v1605, %v1604
        %1622 = vmatprep.subr.bf16.mxu0 0
        %1623 = vmatpush1.bf16.msra.mxu0 %v1613
        %1624 = vmatprep.subr.bf16.mxu0 0
        %1625 = vmatpush1.bf16.msra.mxu0 %v1612
        %1626 = vmatprep.subr.bf16.mxu0 0
        %1627 = vmatpush1.bf16.msra.mxu0 %v1611
        %1628 = vmatprep.subr.bf16.mxu0 0
        %1629 = vmatpush1.bf16.msra.mxu0 %v1610
        %1630 = vmatprep.subr.bf16.mxu0 0
        %1631 = vmatpush1.bf16.msra.mxu0 %v1609
        %1632 = vmatprep.subr.bf16.mxu0 0
        %1633 = vmatpush1.bf16.msra.mxu0 %v1608
        %1634 = vmatprep.subr.bf16.mxu0 0
        %1635 = vmatpush1.bf16.msra.mxu0 %v1607
        %1636 = vmatprep.subr.bf16.mxu0 0
        %1637 = vmatpush1.bf16.msra.mxu0 %v1606
        %1638 = vmatprep.subr.bf16.mxu0 0
        %1639 = vmatpush2.bf16.msra.mxu0 0
        %1640 = vmatprep.subr.bf16.mxu0 0
        %1641 = vmatpush2.bf16.msra.mxu0 0
        %1642 = vmatprep.subr.bf16.mxu0 0
        %1643 = vmatpush2.bf16.msra.mxu0 0
        %1644 = vmatprep.subr.bf16.mxu0 0
        %1645 = vmatpush2.bf16.msra.mxu0 0
        %1646 = vmatprep.subr.bf16.mxu0 0
        %1647 = vmatpush2.bf16.msra.mxu0 0
        %1648 = vmatprep.subr.bf16.mxu0 0
        %1649 = vmatpush2.bf16.msra.mxu0 0
        %1650 = vmatprep.subr.bf16.mxu0 0
        %1651 = vmatpush2.bf16.msra.mxu0 0
        %1652 = vmatprep.subr.bf16.mxu0 0
        %1653 = vmatpush2.bf16.msra.mxu0 0
        %1654 = vmatprep.mubr.bf16.mxu0 0
        %1655 = vmatmul.mubr.bf16.gmra.mxu0 %v1550
        %v1656 = vpop.f32.mrf.mxu0
        %v1657 = vadd.f32 %v1572, %v1656
        %v1658 = vpop.f32.mrf.mxu0
        %v1659 = vpop.f32.mrf.mxu0
        %v1660 = vadd.f32 %v1572, %v1659
        %v1661 = vpop.f32.mrf.mxu0
        %1662 = vdwg.mxu0
        %v1663 = vmul.f32 %v1657, 0.5
        %v1664 = vmul.f32 %v1660, 0.5
        %v1665 = vmul.f32 %v1657, %v1657
        %v1666 = vmul.f32 %v1660, %v1660
        %v1667 = vmul.f32 %v1665, %v1657
        %v1668 = vmul.f32 %v1666, %v1660
        %v1669 = vmul.f32 %v1667, 0.044715
        %v1670 = vmul.f32 %v1668, 0.044715
        %v1671 = vadd.f32 %v1657, %v1669
        %v1672 = vadd.f32 %v1660, %v1670
        %v1673 = vmul.f32 %v1671, 0.7978846
        %v1674 = vmul.f32 %v1672, 0.7978846
        %v1675 = vtanh.pop %v1673
        %v1676 = vtanh.pop %v1674
        %v1677 = vadd.f32 %v1675, 1.0
        %v1678 = vadd.f32 %v1676, 1.0
        %v1679 = vmul.f32 %v1663, %v1677
        %v1680 = vmul.f32 %v1664, %v1678
        %v1681 = vpack.c.bf16 %v1680, %v1679
        %v1682 = vld [vmem:[#allocation12] sm:$0xf]
        %v1683 = vld [vmem:[#allocation12 + $0x4] sm:$0xf]
        %v1684 = vld [vmem:[#allocation12 + $0x8] sm:$0xf]
        %v1685 = vld [vmem:[#allocation12 + $0xc] sm:$0xf]
        %v1686 = vld [vmem:[#allocation12 + $0x10] sm:$0xf]
        %v1687 = vld [vmem:[#allocation12 + $0x14] sm:$0xf]
        %v1688 = vld [vmem:[#allocation12 + $0x18] sm:$0xf]
        %v1689 = vld [vmem:[#allocation12 + $0x1c] sm:$0xf]
        %v1690 = vld [vmem:[#allocation12 + $0x20] sm:$0xf]
        %v1691 = vld [vmem:[#allocation12 + $0x24] sm:$0xf]
        %v1692 = vld [vmem:[#allocation12 + $0x28] sm:$0xf]
        %v1693 = vld [vmem:[#allocation12 + $0x2c] sm:$0xf]
        %v1694 = vld [vmem:[#allocation12 + $0x30] sm:$0xf]
        %v1695 = vld [vmem:[#allocation12 + $0x34] sm:$0xf]
        %v1696 = vld [vmem:[#allocation12 + $0x38] sm:$0xf]
        %v1697 = vld [vmem:[#allocation12 + $0x3c] sm:$0xf]
        %v1698 = vld [vmem:[%s10] sm:$0x1]
        %v1700 = vlaneseq
        %v1701 = vshrl.u32 %v1700, 7
        %v1702 = vsub.s32 0, %v1701
        %v1703 = vrot.slane %v1698, %v1702
        %v1721 = vunpack.c.l.b16 %v1682
        %v1722 = vunpack.c.l.b16 %v1683
        %v1723 = vunpack.c.l.b16 %v1684
        %v1724 = vunpack.c.l.b16 %v1685
        %v1725 = vunpack.c.l.b16 %v1686
        %v1726 = vunpack.c.l.b16 %v1687
        %v1727 = vunpack.c.l.b16 %v1688
        %v1728 = vunpack.c.l.b16 %v1689
        %v1729 = vunpack.c.l.b16 %v1690
        %v1730 = vunpack.c.l.b16 %v1691
        %v1731 = vunpack.c.l.b16 %v1692
        %v1732 = vunpack.c.l.b16 %v1693
        %v1733 = vunpack.c.l.b16 %v1694
        %v1734 = vunpack.c.l.b16 %v1695
        %v1735 = vunpack.c.l.b16 %v1696
        %v1736 = vunpack.c.l.b16 %v1697
        %v1737 = vpack.c.b16 %v1722, %v1721
        %v1738 = vpack.c.b16 %v1724, %v1723
        %v1739 = vpack.c.b16 %v1726, %v1725
        %v1740 = vpack.c.b16 %v1728, %v1727
        %v1741 = vpack.c.b16 %v1730, %v1729
        %v1742 = vpack.c.b16 %v1732, %v1731
        %v1743 = vpack.c.b16 %v1734, %v1733
        %v1744 = vpack.c.b16 %v1736, %v1735
        %1753 = vmatprep.subr.bf16.mxu0 0
        %1754 = vmatpush1.bf16.msra.mxu0 %v1744
        %1755 = vmatprep.subr.bf16.mxu0 0
        %1756 = vmatpush1.bf16.msra.mxu0 %v1743
        %1757 = vmatprep.subr.bf16.mxu0 0
        %1758 = vmatpush1.bf16.msra.mxu0 %v1742
        %1759 = vmatprep.subr.bf16.mxu0 0
        %1760 = vmatpush1.bf16.msra.mxu0 %v1741
        %1761 = vmatprep.subr.bf16.mxu0 0
        %1762 = vmatpush1.bf16.msra.mxu0 %v1740
        %1763 = vmatprep.subr.bf16.mxu0 0
        %1764 = vmatpush1.bf16.msra.mxu0 %v1739
        %1765 = vmatprep.subr.bf16.mxu0 0
        %1766 = vmatpush1.bf16.msra.mxu0 %v1738
        %1767 = vmatprep.subr.bf16.mxu0 0
        %1768 = vmatpush1.bf16.msra.mxu0 %v1737
        %1769 = vmatprep.subr.bf16.mxu0 0
        %1770 = vmatpush2.bf16.msra.mxu0 0
        %1771 = vmatprep.subr.bf16.mxu0 0
        %1772 = vmatpush2.bf16.msra.mxu0 0
        %1773 = vmatprep.subr.bf16.mxu0 0
        %1774 = vmatpush2.bf16.msra.mxu0 0
        %1775 = vmatprep.subr.bf16.mxu0 0
        %1776 = vmatpush2.bf16.msra.mxu0 0
        %1777 = vmatprep.subr.bf16.mxu0 0
        %1778 = vmatpush2.bf16.msra.mxu0 0
        %1779 = vmatprep.subr.bf16.mxu0 0
        %1780 = vmatpush2.bf16.msra.mxu0 0
        %1781 = vmatprep.subr.bf16.mxu0 0
        %1782 = vmatpush2.bf16.msra.mxu0 0
        %1783 = vmatprep.subr.bf16.mxu0 0
        %1784 = vmatpush2.bf16.msra.mxu0 0
        %1785 = vmatprep.mubr.bf16.mxu0 0
        %1786 = vmatmul.mubr.bf16.gmra.mxu0 %v1681
        %v1787 = vpop.f32.mrf.mxu0
        %v1788 = vadd.f32 %v1703, %v1787
        %v1789 = vpop.f32.mrf.mxu0
        %v1790 = vpop.f32.mrf.mxu0
        %v1791 = vadd.f32 %v1703, %v1790
        %v1792 = vpop.f32.mrf.mxu0
        %1793 = vdwg.mxu0
        %v1794 = vld [vmem:[%s443] sm:$0xff]
        %v1795 = vld [vmem:[%s443 + $0x8] sm:$0xff]
        %v1796 = vadd.f32 %v1794, %v1788
        %v1797 = vadd.f32 %v1795, %v1791
        %1798 = vst [vmem:[%s502] sm:$0xff] %v1796
        %1799 = vst [vmem:[%s502 + $0x8] sm:$0xff] %v1797
        %s1800 = sand.u32 %s282, 1
        %s1801 = scalar_lea.sflag [#allocation5], %s1800
        %s1802 = sand.u32 %s282, 1
        %s1803 = smul.addr %s1802, 16
        %s1804 = scalar_lea.vmem [#allocation14], %s1803
        // Predicated region
        $region89: #{tpu_custom_call.1} parent=63 // pred_check
          %p1805 = pneg %p292
        $region90: #{tpu_custom_call.1} parent=63 // pred_check_branch
          %1807 = sbr.rel (%p1805) target = $region92
        $region91: #{tpu_custom_call.1} parent=63 // pred_region
          %s1809 = ssub.s32 256, 256
          %1810 = vsyncadd %s1801, %s1809
          %s1811 = smul.addr %s33, 2
          %s1812 = smul.addr %s1811, 128
          %s1813 = scalar_lea.hbm %s11, %s1812
          %s1814 = sshll.u32 %s1804, 4
          %s1815 = int_to_ptr.vmem [resolvable:$true] %s1814
          %1820 = dma.vmem_to_hbm [thread:$0]  %s1815, 256, %s1813, %s1801, 128, 128, 8
        $region92: #{tpu_custom_call.1} parent=63 // pred_fallthru
          _
      $region64: #{tpu_custom_call.1} parent=5 // pred_fallthru
        _
      %p1821 = scmp.le.s32.totalorder 2, %s28
      // Predicated region
      $region93: #{tpu_custom_call.1} parent=5 // pred_check
        %p1822 = pneg %p1821
      $region94: #{tpu_custom_call.1} parent=5 // pred_check_branch
        %1824 = sbr.rel (%p1822) target = $region96
      $region95: #{tpu_custom_call.1} parent=5 // pred_region
        %s1825 = ssub.s32 %s28, 2
        // Predicated region
        $region97: #{tpu_custom_call.1} parent=95 // pred_check
          %p1826 = pneg %p298
        $region98: #{tpu_custom_call.1} parent=95 // pred_check_branch
          %1828 = sbr.rel (%p1826) target = $region100
        $region99: #{tpu_custom_call.1} parent=95 // pred_region
          %s1829 = sand.u32 %s283, 1
          %s1830 = scalar_lea.sflag [#allocation5], %s1829
          %s1831 = sand.u32 %s283, 1
          %s1832 = smul.addr %s1831, 16
          %s1833 = scalar_lea.vmem [#allocation14], %s1832
          %1834 = dma.done %s1830, 256
        $region100: #{tpu_custom_call.1} parent=95 // pred_fallthru
          _
      $region96: #{tpu_custom_call.1} parent=5 // pred_fallthru
        _
    $region6: #{tpu_custom_call.1} parent=1 // loop_footer
      %s32 = sadd.s32 1, %s28
    $region7: #{tpu_custom_call.1} parent=1 // loop_footer_branch
      %27 = sbr.rel target = $region3
    $region8: #{tpu_custom_call.1} parent=1 // loop_exit
      _
    %1835 = vsyncpa [#allocation4], 1
    %s1836 = scalar_lea.sflag [#allocation4], 1
    %1837 = vsyncpa %s1836, 1
    %1838 = vsyncpa [#allocation7], 1
    %s1839 = scalar_lea.sflag [#allocation7], 1
    %1840 = vsyncpa %s1839, 1
    %1841 = vsyncpa [#allocation10], 1
    %1842 = vsyncpa [#allocation13], 1
    %1843 = vsyncpa [#allocation5], 1
    %s1844 = scalar_lea.sflag [#allocation5], 1
    %1845 = vsyncpa %s1844, 1

</llo_original>
